<compile_context>
chip_gen: v6e
topology: v6e:2x2x1
jax: 0.10.0
libtpu: 0.0.40
codegen_flags: <defaults>
</compile_context>

<pallas_src>
import functools
import math

import jax
import jax.numpy as jnp
from jax import lax
from jax.experimental import pallas as pl
from jax.experimental.pallas import tpu as pltpu


def _gat_forward_kernel(x_ref, adj_ref, *rest, alpha, nheads, nhid, nmid):
    """Whole GAT forward for one batch element (all layers, all heads fused).

    x_ref:   (1, N, nfeat)  node features (f32)
    adj_ref: (1, N, N)      adjacency edge mask (int8)
    rest:    W0, A0, [Wm_i, Am_i]*nmid, Wo, Ao, out_ref, act_ref
             W*: (Fin, H*Fout) bf16 head-concatenated projections
             A*: (H*Fout, 2H)  bf16 block-diagonal attention vectors [A1 | A2]
             out_ref: (1, N, nclass) f32
             act_ref: (N, H*nhid) f32 VMEM scratch holding the inter-layer activation
    """
    n_wa = 2 * (nmid + 2)
    w_refs = rest[:n_wa]
    out_ref = rest[n_wa]
    act_ref = rest[n_wa + 1]

    x = x_ref[0]                                            # (N, nfeat) f32

    # Additive edge-mask bias: computed ONCE per batch element, reused by every layer/head.
    edge = adj_ref[0].astype(jnp.float32) > 0.0             # (N, N) bool (single i8 unpack)
    bias = jnp.where(edge, jnp.float32(0.0), jnp.float32(-9e15))

    def heads_attention(cur, w_ref, a_ref, H):
        """Projection + attention weights for ALL heads of one layer.

        cur: (N, Fin) f32 -> hb (N, H*Fout) bf16, attn (H, N, N) bf16.
        """
        W = w_ref[...]                                      # (Fin, H*Fout) bf16
        A = a_ref[...]                                      # (H*Fout, 2H)  bf16
        h = jnp.dot(cur.astype(jnp.bfloat16), W,
                    preferred_element_type=jnp.float32)     # (N, H*Fout) f32
        hb = h.astype(jnp.bfloat16)
        # Both attention projections for every head in ONE matmul (A is block-diagonal):
        #   f12[n, h]     = h_head[n] . a1_head
        #   f12[n, H + h] = h_head[n] . a2_head
        f12 = jnp.dot(hb, A, preferred_element_type=jnp.float32)       # (N, 2H) f32
        # Row form (2H, N) via one tiny identity matmul (single MXU push for all heads).
        f12_t = lax.dot_general(jnp.eye(2 * H, dtype=jnp.float32), f12,
                                (((1,), (1,)), ((), ())),
                                preferred_element_type=jnp.float32)    # (2H, N)
        # Head-batched logits: e[h, i, j] = LeakyReLU(h_i.a1_h + h_j.a2_h) + mask_bias[i, j]
        e = f12_t[:H][:, :, None] + f12_t[H:][:, None, :]   # (H, N, N)
        e = jnp.maximum(e, alpha * e)                       # LeakyReLU, 0 < alpha < 1
        e = e + bias[None, :, :]                            # mask non-edges
        e = e - jnp.max(e, axis=-1, keepdims=True)          # stable softmax (all heads)
        p = jnp.exp(e)
        denom = jnp.sum(p, axis=-1, keepdims=True)
        attn = p * pl.reciprocal(denom, approx=True)        # (H, N, N)
        return hb, attn.astype(jnp.bfloat16)

    def elu(v):
        # ELU(alpha=1); clamp the exp argument so the discarded branch never infs.
        return jnp.where(v > 0, v, jnp.exp(jnp.minimum(v, 0.0)) - 1.0)

    # ---- first layer: per-head ELU (concat=True), written straight into the scratch.
    hb, attn = heads_attention(x, w_refs[0], w_refs[1], nheads)
    for head in range(nheads):
        sl = slice(head * nhid, (head + 1) * nhid)
        hp = jnp.dot(attn[head], hb[:, sl], preferred_element_type=jnp.float32)
        act_ref[:, sl] = elu(hp)

    # ---- middle layers: per-head ELU + fused `+ cur_input` residual.
    for li in range(nmid):
        w_ref = w_refs[2 + 2 * li]
        a_ref = w_refs[3 + 2 * li]
        cur = act_ref[...]                                  # read before any write this layer
        hb, attn = heads_attention(cur, w_ref, a_ref, nheads)
        for head in range(nheads):
            sl = slice(head * nhid, (head + 1) * nhid)
            hp = jnp.dot(attn[head], hb[:, sl], preferred_element_type=jnp.float32)
            act_ref[:, sl] = elu(hp) + cur[:, sl]

    # ---- output layer (single head, concat=False) + F.elu + `+ input` residual.
    cur = act_ref[...]
    hb, attn = heads_attention(cur, w_refs[n_wa - 2], w_refs[n_wa - 1], 1)
    hp = jnp.dot(attn[0], hb, preferred_element_type=jnp.float32)    # (N, nclass)
    out_ref[0] = (elu(hp) + x).astype(out_ref.dtype)


# ------------------------------ wrapper -------------------------------------

def _prep_layer(W_stacked, a_stacked):
    """(H, Fin, Fout), (H, 2*Fout, 1) -> bf16 W_cat (Fin, H*Fout), A_cat (H*Fout, 2H)."""
    H, Fin, Fout = W_stacked.shape
    W_cat = jnp.transpose(W_stacked, (1, 0, 2)).reshape(Fin, H * Fout).astype(jnp.bfloat16)
    a1 = a_stacked[:, :Fout, 0]                      # (H, Fout)
    a2 = a_stacked[:, Fout:, 0]                      # (H, Fout)
    eye_h = jnp.eye(H, dtype=jnp.float32)
    A1 = (a1[:, :, None] * eye_h[:, None, :]).reshape(H * Fout, H)
    A2 = (a2[:, :, None] * eye_h[:, None, :]).reshape(H * Fout, H)
    A_cat = jnp.concatenate([A1, A2], axis=1).astype(jnp.bfloat16)   # (H*Fout, 2H)
    return W_cat, A_cat


def gat_forward(x, adj, params, *, alpha, nlayers):
    """Whole GAT forward in ONE pallas_call; grid over batch only."""
    B, N, nfeat = x.shape
    W0, a0 = params["attentions"]
    nheads, _, nhid = W0.shape
    Wo, ao = params["out_att"]
    nclass = Wo.shape[2]
    nmid = nlayers - 2 if nlayers > 2 else 0
    assert len(params["mid"]) == nmid
    assert Wo.shape[0] == 1 and Wo.shape[1] == nheads * nhid
    assert nclass == nfeat, "final `x + input` residual requires nclass == nfeat"

    # adj is only ever used as `adj > 0`; pass it as an int8 edge mask (4x less traffic).
    adj_i8 = (adj > 0).astype(jnp.int8)

    layer_wa = [_prep_layer(W0, a0)]
    for (Wm, am) in params["mid"]:
        layer_wa.append(_prep_layer(Wm, am))
    layer_wa.append(_prep_layer(Wo, ao))

    weight_ops, weight_specs = [], []
    for (Wc, Ac) in layer_wa:
        weight_ops += [Wc, Ac]
        weight_specs += [pl.BlockSpec(Wc.shape, lambda b: (0, 0)),
                         pl.BlockSpec(Ac.shape, lambda b: (0, 0))]

    kernel = functools.partial(_gat_forward_kernel, alpha=alpha, nheads=nheads,
                               nhid=nhid, nmid=nmid)

    return pl.pallas_call(
        kernel,
        out_shape=jax.ShapeDtypeStruct((B, N, nclass), jnp.float32),
        grid=(B,),
        in_specs=[pl.BlockSpec((1, N, nfeat), lambda b: (b, 0, 0)),
                  pl.BlockSpec((1, N, N), lambda b: (b, 0, 0))] + weight_specs,
        out_specs=pl.BlockSpec((1, N, nclass), lambda b: (b, 0, 0)),
        scratch_shapes=[pltpu.VMEM((N, nheads * nhid), jnp.float32)],
        compiler_params=pltpu.CompilerParams(dimension_semantics=("parallel",)),
    )(x, adj_i8, *weight_ops)


# ----------------------------- parameter init -------------------------------

def _xavier_uniform(key, shape, gain):
    fan_in, fan_out = shape[0], shape[1]
    bound = gain * math.sqrt(6.0 / (fan_in + fan_out))
    return jax.random.uniform(key, shape, jnp.float32, -bound, bound)


def init_gat_params(key, nfeat, nhid, nclass, nheads, nlayers):
    gain = 1.414

    def head_stack(key, fin, fout, nh):
        Ws, As = [], []
        for _ in range(nh):
            key, kw, ka = jax.random.split(key, 3)
            Ws.append(_xavier_uniform(kw, (fin, fout), gain))
            As.append(_xavier_uniform(ka, (2 * fout, 1), gain))
        return key, jnp.stack(Ws), jnp.stack(As)

    params = {"mid": []}
    key, W0, a0 = head_stack(key, nfeat, nhid, nheads)
    params["attentions"] = (W0, a0)
    if nlayers > 2:
        for _ in range(nlayers - 2):
            key, Wm, am = head_stack(key, nhid * nheads, nhid, nheads)
            params["mid"].append((Wm, am))
    key, Wo, ao = head_stack(key, nhid * nheads, nclass, 1)
    params["out_att"] = (Wo, ao)
    return params


if __name__ == "__main__":
    # Small shapes consistent with the module; the `x + input` residual requires nclass == nfeat.
    B, N = 2, 16
    nfeat, nhid, nclass, nheads, nlayers = 32, 8, 32, 4, 3
    alpha = 0.2

    key = jax.random.PRNGKey(0)
    key, kx, kadj, kp = jax.random.split(key, 4)

    x = jax.random.normal(kx, (B, N, nfeat), jnp.float32)
    # random dense adjacency with self-loops
    adj = (jax.random.uniform(kadj, (B, N, N)) > 0.5).astype(jnp.float32)
    adj = jnp.maximum(adj, jnp.eye(N, dtype=jnp.float32)[None, :, :])

    params = init_gat_params(kp, nfeat, nhid, nclass, nheads, nlayers)

    out = gat_forward(x, adj, params, alpha=alpha, nlayers=nlayers)
    out = jax.block_until_ready(out)
    assert out.shape == (B, N, nclass), out.shape
    assert bool(jnp.all(jnp.isfinite(out)))
    print("KERNEL_OK")
</pallas_src>

<mosaic_0001>
module attributes {stable_mosaic.version = 11 : i64} {
  func.func @_gat_forward_kernel(%arg0: i32, %arg1: memref<1x16x32xf32, #tpu.memory_space<vmem>>, %arg2: memref<1x16x16xi8, #tpu.memory_space<vmem>>, %arg3: memref<32x32xbf16, #tpu.memory_space<vmem>>, %arg4: memref<32x8xbf16, #tpu.memory_space<vmem>>, %arg5: memref<32x32xbf16, #tpu.memory_space<vmem>>, %arg6: memref<32x8xbf16, #tpu.memory_space<vmem>>, %arg7: memref<32x32xbf16, #tpu.memory_space<vmem>>, %arg8: memref<32x2xbf16, #tpu.memory_space<vmem>>, %arg9: memref<1x16x32xf32, #tpu.memory_space<vmem>>, %arg10: memref<16x32xf32, #tpu.memory_space<vmem>>) attributes {dimension_semantics = [#tpu.dimension_semantics<parallel>], iteration_bounds = array<i64: 2>, scalar_prefetch = 0 : i64, scratch_operands = 1 : i64, tpu.core_type = #tpu.core_type<tc>, window_params = [{transform_indices = @transform_0, window_bounds = array<i64: 1, 16, 32>}, {transform_indices = @transform_1, window_bounds = array<i64: 1, 16, 16>}, {pipeline_mode = #tpu.pipeline_mode<synchronous>, transform_indices = @transform_2, window_bounds = array<i64: 32, 32>}, {pipeline_mode = #tpu.pipeline_mode<synchronous>, transform_indices = @transform_3, window_bounds = array<i64: 32, 8>}, {pipeline_mode = #tpu.pipeline_mode<synchronous>, transform_indices = @transform_4, window_bounds = array<i64: 32, 32>}, {pipeline_mode = #tpu.pipeline_mode<synchronous>, transform_indices = @transform_5, window_bounds = array<i64: 32, 8>}, {pipeline_mode = #tpu.pipeline_mode<synchronous>, transform_indices = @transform_6, window_bounds = array<i64: 32, 32>}, {pipeline_mode = #tpu.pipeline_mode<synchronous>, transform_indices = @transform_7, window_bounds = array<i64: 32, 2>}, {transform_indices = @transform_8, window_bounds = array<i64: 1, 16, 32>}]} {
    %c0 = arith.constant 0 : index
    %c0_0 = arith.constant 0 : index
    %c0_1 = arith.constant 0 : index
    %0 = vector.load %arg1[%c0, %c0_0, %c0_1] : memref<1x16x32xf32, #tpu.memory_space<vmem>>, vector<1x16x32xf32>
    %1 = vector.shape_cast %0 : vector<1x16x32xf32> to vector<16x32xf32>
    %c0_2 = arith.constant 0 : index
    %c0_3 = arith.constant 0 : index
    %c0_4 = arith.constant 0 : index
    %2 = vector.load %arg2[%c0_2, %c0_3, %c0_4] : memref<1x16x16xi8, #tpu.memory_space<vmem>>, vector<1x16x16xi8>
    %3 = vector.shape_cast %2 : vector<1x16x16xi8> to vector<16x16xi8>
    %4 = arith.sitofp %3 : vector<16x16xi8> to vector<16x16xf32>
    %cst = arith.constant 0.000000e+00 : f32
    %5 = vector.broadcast %cst : f32 to vector<16x16xf32>
    %6 = arith.cmpf ogt, %4, %5 : vector<16x16xf32>
    %cst_5 = arith.constant 0.000000e+00 : f32
    %cst_6 = arith.constant -9.000000e+15 : f32
    %7 = vector.broadcast %cst_5 : f32 to vector<16x16xf32>
    %8 = vector.broadcast %cst_6 : f32 to vector<16x16xf32>
    %9 = arith.select %6, %7, %8 : vector<16x16xi1>, vector<16x16xf32>
    %c0_7 = arith.constant 0 : index
    %c0_8 = arith.constant 0 : index
    %10 = vector.load %arg3[%c0_7, %c0_8] : memref<32x32xbf16, #tpu.memory_space<vmem>>, vector<32x32xbf16>
    %c0_9 = arith.constant 0 : index
    %c0_10 = arith.constant 0 : index
    %11 = vector.load %arg4[%c0_9, %c0_10] : memref<32x8xbf16, #tpu.memory_space<vmem>>, vector<32x8xbf16>
    %12 = arith.truncf %1 : vector<16x32xf32> to vector<16x32xbf16>
    %cst_11 = arith.constant dense<0.000000e+00> : vector<16x32xf32>
    %13 = tpu.matmul %12, %10, %cst_11 {dimension_numbers = #tpu.dot_dimension_numbers<[1], [0], [0], [1], [0, 0, 1, 1], [], []>} : vector<16x32xbf16>, vector<32x32xbf16>, vector<16x32xf32> -> vector<16x32xf32>
    %14 = arith.truncf %13 : vector<16x32xf32> to vector<16x32xbf16>
    %cst_12 = arith.constant dense<0.000000e+00> : vector<16x8xf32>
    %15 = tpu.matmul %14, %11, %cst_12 {dimension_numbers = #tpu.dot_dimension_numbers<[1], [0], [0], [1], [0, 0, 1, 1], [], []>} : vector<16x32xbf16>, vector<32x8xbf16>, vector<16x8xf32> -> vector<16x8xf32>
    %16 = tpu.iota {dimensions = array<i32: 0>} : vector<8x8xi32>
    %17 = tpu.iota {dimensions = array<i32: 1>} : vector<8x8xi32>
    %c0_i32 = arith.constant 0 : i32
    %18 = vector.broadcast %c0_i32 : i32 to vector<8x8xi32>
    %19 = arith.addi %16, %18 : vector<8x8xi32>
    %20 = arith.cmpi eq, %19, %17 : vector<8x8xi32>
    %21 = arith.extui %20 : vector<8x8xi1> to vector<8x8xi32>
    %22 = arith.sitofp %21 : vector<8x8xi32> to vector<8x8xf32>
    %cst_13 = arith.constant dense<0.000000e+00> : vector<8x16xf32>
    %23 = tpu.matmul %22, %15, %cst_13 {dimension_numbers = #tpu.dot_dimension_numbers<[1], [1], [0], [0], [0, 0, 1, 0], [], []>} : vector<8x8xf32>, vector<16x8xf32>, vector<8x16xf32> -> vector<8x16xf32>
    %24 = vector.extract_strided_slice %23 {offsets = [0, 0], sizes = [4, 16], strides = [1, 1]} : vector<8x16xf32> to vector<4x16xf32>
    %25 = vector.shape_cast %24 : vector<4x16xf32> to vector<4x16x1xf32>
    %26 = vector.extract_strided_slice %23 {offsets = [4, 0], sizes = [4, 16], strides = [1, 1]} : vector<8x16xf32> to vector<4x16xf32>
    %27 = vector.shape_cast %26 : vector<4x16xf32> to vector<4x1x16xf32>
    %28 = vector.broadcast %25 : vector<4x16x1xf32> to vector<4x16x16xf32>
    %29 = vector.broadcast %27 : vector<4x1x16xf32> to vector<4x16x16xf32>
    %30 = arith.addf %28, %29 : vector<4x16x16xf32>
    %cst_14 = arith.constant 2.000000e-01 : f32
    %31 = vector.broadcast %cst_14 : f32 to vector<4x16x16xf32>
    %32 = arith.mulf %31, %30 : vector<4x16x16xf32>
    %33 = arith.maximumf %30, %32 : vector<4x16x16xf32>
    %34 = vector.shape_cast %9 : vector<16x16xf32> to vector<1x16x16xf32>
    %35 = vector.broadcast %34 : vector<1x16x16xf32> to vector<4x16x16xf32>
    %36 = arith.addf %33, %35 : vector<4x16x16xf32>
    %cst_15 = arith.constant dense<0xFF800000> : vector<4x16xf32>
    %37 = vector.multi_reduction <maximumf>, %36, %cst_15 [2] : vector<4x16x16xf32> to vector<4x16xf32>
    %38 = vector.shape_cast %37 : vector<4x16xf32> to vector<4x16x1xf32>
    %39 = vector.broadcast %38 : vector<4x16x1xf32> to vector<4x16x16xf32>
    %40 = arith.subf %36, %39 : vector<4x16x16xf32>
    %41 = math.exp %40 : vector<4x16x16xf32>
    %cst_16 = arith.constant dense<0.000000e+00> : vector<4x16xf32>
    %42 = vector.multi_reduction <add>, %41, %cst_16 [2] : vector<4x16x16xf32> to vector<4x16xf32>
    %43 = vector.shape_cast %42 : vector<4x16xf32> to vector<4x16x1xf32>
    %44 = tpu.reciprocal %43 {approx = true} : vector<4x16x1xf32> -> vector<4x16x1xf32>
    %45 = vector.broadcast %44 : vector<4x16x1xf32> to vector<4x16x16xf32>
    %46 = arith.mulf %41, %45 : vector<4x16x16xf32>
    %47 = arith.truncf %46 : vector<4x16x16xf32> to vector<4x16x16xbf16>
    %48 = vector.extract_strided_slice %47 {offsets = [0, 0, 0], sizes = [1, 16, 16], strides = [1, 1, 1]} : vector<4x16x16xbf16> to vector<1x16x16xbf16>
    %49 = vector.shape_cast %48 : vector<1x16x16xbf16> to vector<16x16xbf16>
    %50 = vector.extract_strided_slice %14 {offsets = [0, 0], sizes = [16, 8], strides = [1, 1]} : vector<16x32xbf16> to vector<16x8xbf16>
    %cst_17 = arith.constant dense<0.000000e+00> : vector<16x8xf32>
    %51 = tpu.matmul %49, %50, %cst_17 {dimension_numbers = #tpu.dot_dimension_numbers<[1], [0], [0], [1], [0, 0, 1, 1], [], []>} : vector<16x16xbf16>, vector<16x8xbf16>, vector<16x8xf32> -> vector<16x8xf32>
    %cst_18 = arith.constant 0.000000e+00 : f32
    %52 = vector.broadcast %cst_18 : f32 to vector<16x8xf32>
    %53 = arith.cmpf ogt, %51, %52 : vector<16x8xf32>
    %cst_19 = arith.constant 0.000000e+00 : f32
    %54 = vector.broadcast %cst_19 : f32 to vector<16x8xf32>
    %55 = arith.minimumf %51, %54 : vector<16x8xf32>
    %56 = math.exp %55 : vector<16x8xf32>
    %cst_20 = arith.constant 1.000000e+00 : f32
    %57 = vector.broadcast %cst_20 : f32 to vector<16x8xf32>
    %58 = arith.subf %56, %57 : vector<16x8xf32>
    %59 = arith.select %53, %51, %58 : vector<16x8xi1>, vector<16x8xf32>
    %c0_21 = arith.constant 0 : index
    %c0_22 = arith.constant 0 : index
    %60 = vector.load %arg10[%c0_21, %c0_22] : memref<16x32xf32, #tpu.memory_space<vmem>>, vector<16x8xf32>
    tpu.vector_store %arg10[%c0_21, %c0_22], %59 {strides = array<i32>} : memref<16x32xf32, #tpu.memory_space<vmem>>, vector<16x8xf32>,
    %61 = vector.extract_strided_slice %47 {offsets = [1, 0, 0], sizes = [1, 16, 16], strides = [1, 1, 1]} : vector<4x16x16xbf16> to vector<1x16x16xbf16>
    %62 = vector.shape_cast %61 : vector<1x16x16xbf16> to vector<16x16xbf16>
    %63 = vector.extract_strided_slice %14 {offsets = [0, 8], sizes = [16, 8], strides = [1, 1]} : vector<16x32xbf16> to vector<16x8xbf16>
    %cst_23 = arith.constant dense<0.000000e+00> : vector<16x8xf32>
    %64 = tpu.matmul %62, %63, %cst_23 {dimension_numbers = #tpu.dot_dimension_numbers<[1], [0], [0], [1], [0, 0, 1, 1], [], []>} : vector<16x16xbf16>, vector<16x8xbf16>, vector<16x8xf32> -> vector<16x8xf32>
    %cst_24 = arith.constant 0.000000e+00 : f32
    %65 = vector.broadcast %cst_24 : f32 to vector<16x8xf32>
    %66 = arith.cmpf ogt, %64, %65 : vector<16x8xf32>
    %cst_25 = arith.constant 0.000000e+00 : f32
    %67 = vector.broadcast %cst_25 : f32 to vector<16x8xf32>
    %68 = arith.minimumf %64, %67 : vector<16x8xf32>
    %69 = math.exp %68 : vector<16x8xf32>
    %cst_26 = arith.constant 1.000000e+00 : f32
    %70 = vector.broadcast %cst_26 : f32 to vector<16x8xf32>
    %71 = arith.subf %69, %70 : vector<16x8xf32>
    %72 = arith.select %66, %64, %71 : vector<16x8xi1>, vector<16x8xf32>
    %c0_27 = arith.constant 0 : index
    %c8 = arith.constant 8 : index
    %73 = vector.load %arg10[%c0_27, %c8] : memref<16x32xf32, #tpu.memory_space<vmem>>, vector<16x8xf32>
    tpu.vector_store %arg10[%c0_27, %c8], %72 {strides = array<i32>} : memref<16x32xf32, #tpu.memory_space<vmem>>, vector<16x8xf32>,
    %74 = vector.extract_strided_slice %47 {offsets = [2, 0, 0], sizes = [1, 16, 16], strides = [1, 1, 1]} : vector<4x16x16xbf16> to vector<1x16x16xbf16>
    %75 = vector.shape_cast %74 : vector<1x16x16xbf16> to vector<16x16xbf16>
    %76 = vector.extract_strided_slice %14 {offsets = [0, 16], sizes = [16, 8], strides = [1, 1]} : vector<16x32xbf16> to vector<16x8xbf16>
    %cst_28 = arith.constant dense<0.000000e+00> : vector<16x8xf32>
    %77 = tpu.matmul %75, %76, %cst_28 {dimension_numbers = #tpu.dot_dimension_numbers<[1], [0], [0], [1], [0, 0, 1, 1], [], []>} : vector<16x16xbf16>, vector<16x8xbf16>, vector<16x8xf32> -> vector<16x8xf32>
    %cst_29 = arith.constant 0.000000e+00 : f32
    %78 = vector.broadcast %cst_29 : f32 to vector<16x8xf32>
    %79 = arith.cmpf ogt, %77, %78 : vector<16x8xf32>
    %cst_30 = arith.constant 0.000000e+00 : f32
    %80 = vector.broadcast %cst_30 : f32 to vector<16x8xf32>
    %81 = arith.minimumf %77, %80 : vector<16x8xf32>
    %82 = math.exp %81 : vector<16x8xf32>
    %cst_31 = arith.constant 1.000000e+00 : f32
    %83 = vector.broadcast %cst_31 : f32 to vector<16x8xf32>
    %84 = arith.subf %82, %83 : vector<16x8xf32>
    %85 = arith.select %79, %77, %84 : vector<16x8xi1>, vector<16x8xf32>
    %c0_32 = arith.constant 0 : index
    %c16 = arith.constant 16 : index
    %86 = vector.load %arg10[%c0_32, %c16] : memref<16x32xf32, #tpu.memory_space<vmem>>, vector<16x8xf32>
    tpu.vector_store %arg10[%c0_32, %c16], %85 {strides = array<i32>} : memref<16x32xf32, #tpu.memory_space<vmem>>, vector<16x8xf32>,
    %87 = vector.extract_strided_slice %47 {offsets = [3, 0, 0], sizes = [1, 16, 16], strides = [1, 1, 1]} : vector<4x16x16xbf16> to vector<1x16x16xbf16>
    %88 = vector.shape_cast %87 : vector<1x16x16xbf16> to vector<16x16xbf16>
    %89 = vector.extract_strided_slice %14 {offsets = [0, 24], sizes = [16, 8], strides = [1, 1]} : vector<16x32xbf16> to vector<16x8xbf16>
    %cst_33 = arith.constant dense<0.000000e+00> : vector<16x8xf32>
    %90 = tpu.matmul %88, %89, %cst_33 {dimension_numbers = #tpu.dot_dimension_numbers<[1], [0], [0], [1], [0, 0, 1, 1], [], []>} : vector<16x16xbf16>, vector<16x8xbf16>, vector<16x8xf32> -> vector<16x8xf32>
    %cst_34 = arith.constant 0.000000e+00 : f32
    %91 = vector.broadcast %cst_34 : f32 to vector<16x8xf32>
    %92 = arith.cmpf ogt, %90, %91 : vector<16x8xf32>
    %cst_35 = arith.constant 0.000000e+00 : f32
    %93 = vector.broadcast %cst_35 : f32 to vector<16x8xf32>
    %94 = arith.minimumf %90, %93 : vector<16x8xf32>
    %95 = math.exp %94 : vector<16x8xf32>
    %cst_36 = arith.constant 1.000000e+00 : f32
    %96 = vector.broadcast %cst_36 : f32 to vector<16x8xf32>
    %97 = arith.subf %95, %96 : vector<16x8xf32>
    %98 = arith.select %92, %90, %97 : vector<16x8xi1>, vector<16x8xf32>
    %c0_37 = arith.constant 0 : index
    %c24 = arith.constant 24 : index
    %99 = vector.load %arg10[%c0_37, %c24] : memref<16x32xf32, #tpu.memory_space<vmem>>, vector<16x8xf32>
    tpu.vector_store %arg10[%c0_37, %c24], %98 {strides = array<i32>} : memref<16x32xf32, #tpu.memory_space<vmem>>, vector<16x8xf32>,
    %c0_38 = arith.constant 0 : index
    %c0_39 = arith.constant 0 : index
    %100 = vector.load %arg10[%c0_38, %c0_39] : memref<16x32xf32, #tpu.memory_space<vmem>>, vector<16x32xf32>
    %c0_40 = arith.constant 0 : index
    %c0_41 = arith.constant 0 : index
    %101 = vector.load %arg5[%c0_40, %c0_41] : memref<32x32xbf16, #tpu.memory_space<vmem>>, vector<32x32xbf16>
    %c0_42 = arith.constant 0 : index
    %c0_43 = arith.constant 0 : index
    %102 = vector.load %arg6[%c0_42, %c0_43] : memref<32x8xbf16, #tpu.memory_space<vmem>>, vector<32x8xbf16>
    %103 = arith.truncf %100 : vector<16x32xf32> to vector<16x32xbf16>
    %cst_44 = arith.constant dense<0.000000e+00> : vector<16x32xf32>
    %104 = tpu.matmul %103, %101, %cst_44 {dimension_numbers = #tpu.dot_dimension_numbers<[1], [0], [0], [1], [0, 0, 1, 1], [], []>} : vector<16x32xbf16>, vector<32x32xbf16>, vector<16x32xf32> -> vector<16x32xf32>
    %105 = arith.truncf %104 : vector<16x32xf32> to vector<16x32xbf16>
    %cst_45 = arith.constant dense<0.000000e+00> : vector<16x8xf32>
    %106 = tpu.matmul %105, %102, %cst_45 {dimension_numbers = #tpu.dot_dimension_numbers<[1], [0], [0], [1], [0, 0, 1, 1], [], []>} : vector<16x32xbf16>, vector<32x8xbf16>, vector<16x8xf32> -> vector<16x8xf32>
    %107 = tpu.iota {dimensions = array<i32: 0>} : vector<8x8xi32>
    %108 = tpu.iota {dimensions = array<i32: 1>} : vector<8x8xi32>
    %c0_i32_46 = arith.constant 0 : i32
    %109 = vector.broadcast %c0_i32_46 : i32 to vector<8x8xi32>
    %110 = arith.addi %107, %109 : vector<8x8xi32>
    %111 = arith.cmpi eq, %110, %108 : vector<8x8xi32>
    %112 = arith.extui %111 : vector<8x8xi1> to vector<8x8xi32>
    %113 = arith.sitofp %112 : vector<8x8xi32> to vector<8x8xf32>
    %cst_47 = arith.constant dense<0.000000e+00> : vector<8x16xf32>
    %114 = tpu.matmul %113, %106, %cst_47 {dimension_numbers = #tpu.dot_dimension_numbers<[1], [1], [0], [0], [0, 0, 1, 0], [], []>} : vector<8x8xf32>, vector<16x8xf32>, vector<8x16xf32> -> vector<8x16xf32>
    %115 = vector.extract_strided_slice %114 {offsets = [0, 0], sizes = [4, 16], strides = [1, 1]} : vector<8x16xf32> to vector<4x16xf32>
    %116 = vector.shape_cast %115 : vector<4x16xf32> to vector<4x16x1xf32>
    %117 = vector.extract_strided_slice %114 {offsets = [4, 0], sizes = [4, 16], strides = [1, 1]} : vector<8x16xf32> to vector<4x16xf32>
    %118 = vector.shape_cast %117 : vector<4x16xf32> to vector<4x1x16xf32>
    %119 = vector.broadcast %116 : vector<4x16x1xf32> to vector<4x16x16xf32>
    %120 = vector.broadcast %118 : vector<4x1x16xf32> to vector<4x16x16xf32>
    %121 = arith.addf %119, %120 : vector<4x16x16xf32>
    %cst_48 = arith.constant 2.000000e-01 : f32
    %122 = vector.broadcast %cst_48 : f32 to vector<4x16x16xf32>
    %123 = arith.mulf %122, %121 : vector<4x16x16xf32>
    %124 = arith.maximumf %121, %123 : vector<4x16x16xf32>
    %125 = vector.shape_cast %9 : vector<16x16xf32> to vector<1x16x16xf32>
    %126 = vector.broadcast %125 : vector<1x16x16xf32> to vector<4x16x16xf32>
    %127 = arith.addf %124, %126 : vector<4x16x16xf32>
    %cst_49 = arith.constant dense<0xFF800000> : vector<4x16xf32>
    %128 = vector.multi_reduction <maximumf>, %127, %cst_49 [2] : vector<4x16x16xf32> to vector<4x16xf32>
    %129 = vector.shape_cast %128 : vector<4x16xf32> to vector<4x16x1xf32>
    %130 = vector.broadcast %129 : vector<4x16x1xf32> to vector<4x16x16xf32>
    %131 = arith.subf %127, %130 : vector<4x16x16xf32>
    %132 = math.exp %131 : vector<4x16x16xf32>
    %cst_50 = arith.constant dense<0.000000e+00> : vector<4x16xf32>
    %133 = vector.multi_reduction <add>, %132, %cst_50 [2] : vector<4x16x16xf32> to vector<4x16xf32>
    %134 = vector.shape_cast %133 : vector<4x16xf32> to vector<4x16x1xf32>
    %135 = tpu.reciprocal %134 {approx = true} : vector<4x16x1xf32> -> vector<4x16x1xf32>
    %136 = vector.broadcast %135 : vector<4x16x1xf32> to vector<4x16x16xf32>
    %137 = arith.mulf %132, %136 : vector<4x16x16xf32>
    %138 = arith.truncf %137 : vector<4x16x16xf32> to vector<4x16x16xbf16>
    %139 = vector.extract_strided_slice %138 {offsets = [0, 0, 0], sizes = [1, 16, 16], strides = [1, 1, 1]} : vector<4x16x16xbf16> to vector<1x16x16xbf16>
    %140 = vector.shape_cast %139 : vector<1x16x16xbf16> to vector<16x16xbf16>
    %141 = vector.extract_strided_slice %105 {offsets = [0, 0], sizes = [16, 8], strides = [1, 1]} : vector<16x32xbf16> to vector<16x8xbf16>
    %cst_51 = arith.constant dense<0.000000e+00> : vector<16x8xf32>
    %142 = tpu.matmul %140, %141, %cst_51 {dimension_numbers = #tpu.dot_dimension_numbers<[1], [0], [0], [1], [0, 0, 1, 1], [], []>} : vector<16x16xbf16>, vector<16x8xbf16>, vector<16x8xf32> -> vector<16x8xf32>
    %cst_52 = arith.constant 0.000000e+00 : f32
    %143 = vector.broadcast %cst_52 : f32 to vector<16x8xf32>
    %144 = arith.cmpf ogt, %142, %143 : vector<16x8xf32>
    %cst_53 = arith.constant 0.000000e+00 : f32
    %145 = vector.broadcast %cst_53 : f32 to vector<16x8xf32>
    %146 = arith.minimumf %142, %145 : vector<16x8xf32>
    %147 = math.exp %146 : vector<16x8xf32>
    %cst_54 = arith.constant 1.000000e+00 : f32
    %148 = vector.broadcast %cst_54 : f32 to vector<16x8xf32>
    %149 = arith.subf %147, %148 : vector<16x8xf32>
    %150 = arith.select %144, %142, %149 : vector<16x8xi1>, vector<16x8xf32>
    %151 = vector.extract_strided_slice %100 {offsets = [0, 0], sizes = [16, 8], strides = [1, 1]} : vector<16x32xf32> to vector<16x8xf32>
    %152 = arith.addf %150, %151 : vector<16x8xf32>
    %c0_55 = arith.constant 0 : index
    %c0_56 = arith.constant 0 : index
    %153 = vector.load %arg10[%c0_55, %c0_56] : memref<16x32xf32, #tpu.memory_space<vmem>>, vector<16x8xf32>
    tpu.vector_store %arg10[%c0_55, %c0_56], %152 {strides = array<i32>} : memref<16x32xf32, #tpu.memory_space<vmem>>, vector<16x8xf32>,
    %154 = vector.extract_strided_slice %138 {offsets = [1, 0, 0], sizes = [1, 16, 16], strides = [1, 1, 1]} : vector<4x16x16xbf16> to vector<1x16x16xbf16>
    %155 = vector.shape_cast %154 : vector<1x16x16xbf16> to vector<16x16xbf16>
    %156 = vector.extract_strided_slice %105 {offsets = [0, 8], sizes = [16, 8], strides = [1, 1]} : vector<16x32xbf16> to vector<16x8xbf16>
    %cst_57 = arith.constant dense<0.000000e+00> : vector<16x8xf32>
    %157 = tpu.matmul %155, %156, %cst_57 {dimension_numbers = #tpu.dot_dimension_numbers<[1], [0], [0], [1], [0, 0, 1, 1], [], []>} : vector<16x16xbf16>, vector<16x8xbf16>, vector<16x8xf32> -> vector<16x8xf32>
    %cst_58 = arith.constant 0.000000e+00 : f32
    %158 = vector.broadcast %cst_58 : f32 to vector<16x8xf32>
    %159 = arith.cmpf ogt, %157, %158 : vector<16x8xf32>
    %cst_59 = arith.constant 0.000000e+00 : f32
    %160 = vector.broadcast %cst_59 : f32 to vector<16x8xf32>
    %161 = arith.minimumf %157, %160 : vector<16x8xf32>
    %162 = math.exp %161 : vector<16x8xf32>
    %cst_60 = arith.constant 1.000000e+00 : f32
    %163 = vector.broadcast %cst_60 : f32 to vector<16x8xf32>
    %164 = arith.subf %162, %163 : vector<16x8xf32>
    %165 = arith.select %159, %157, %164 : vector<16x8xi1>, vector<16x8xf32>
    %166 = vector.extract_strided_slice %100 {offsets = [0, 8], sizes = [16, 8], strides = [1, 1]} : vector<16x32xf32> to vector<16x8xf32>
    %167 = arith.addf %165, %166 : vector<16x8xf32>
    %c0_61 = arith.constant 0 : index
    %c8_62 = arith.constant 8 : index
    %168 = vector.load %arg10[%c0_61, %c8_62] : memref<16x32xf32, #tpu.memory_space<vmem>>, vector<16x8xf32>
    tpu.vector_store %arg10[%c0_61, %c8_62], %167 {strides = array<i32>} : memref<16x32xf32, #tpu.memory_space<vmem>>, vector<16x8xf32>,
    %169 = vector.extract_strided_slice %138 {offsets = [2, 0, 0], sizes = [1, 16, 16], strides = [1, 1, 1]} : vector<4x16x16xbf16> to vector<1x16x16xbf16>
    %170 = vector.shape_cast %169 : vector<1x16x16xbf16> to vector<16x16xbf16>
    %171 = vector.extract_strided_slice %105 {offsets = [0, 16], sizes = [16, 8], strides = [1, 1]} : vector<16x32xbf16> to vector<16x8xbf16>
    %cst_63 = arith.constant dense<0.000000e+00> : vector<16x8xf32>
    %172 = tpu.matmul %170, %171, %cst_63 {dimension_numbers = #tpu.dot_dimension_numbers<[1], [0], [0], [1], [0, 0, 1, 1], [], []>} : vector<16x16xbf16>, vector<16x8xbf16>, vector<16x8xf32> -> vector<16x8xf32>
    %cst_64 = arith.constant 0.000000e+00 : f32
    %173 = vector.broadcast %cst_64 : f32 to vector<16x8xf32>
    %174 = arith.cmpf ogt, %172, %173 : vector<16x8xf32>
    %cst_65 = arith.constant 0.000000e+00 : f32
    %175 = vector.broadcast %cst_65 : f32 to vector<16x8xf32>
    %176 = arith.minimumf %172, %175 : vector<16x8xf32>
    %177 = math.exp %176 : vector<16x8xf32>
    %cst_66 = arith.constant 1.000000e+00 : f32
    %178 = vector.broadcast %cst_66 : f32 to vector<16x8xf32>
    %179 = arith.subf %177, %178 : vector<16x8xf32>
    %180 = arith.select %174, %172, %179 : vector<16x8xi1>, vector<16x8xf32>
    %181 = vector.extract_strided_slice %100 {offsets = [0, 16], sizes = [16, 8], strides = [1, 1]} : vector<16x32xf32> to vector<16x8xf32>
    %182 = arith.addf %180, %181 : vector<16x8xf32>
    %c0_67 = arith.constant 0 : index
    %c16_68 = arith.constant 16 : index
    %183 = vector.load %arg10[%c0_67, %c16_68] : memref<16x32xf32, #tpu.memory_space<vmem>>, vector<16x8xf32>
    tpu.vector_store %arg10[%c0_67, %c16_68], %182 {strides = array<i32>} : memref<16x32xf32, #tpu.memory_space<vmem>>, vector<16x8xf32>,
    %184 = vector.extract_strided_slice %138 {offsets = [3, 0, 0], sizes = [1, 16, 16], strides = [1, 1, 1]} : vector<4x16x16xbf16> to vector<1x16x16xbf16>
    %185 = vector.shape_cast %184 : vector<1x16x16xbf16> to vector<16x16xbf16>
    %186 = vector.extract_strided_slice %105 {offsets = [0, 24], sizes = [16, 8], strides = [1, 1]} : vector<16x32xbf16> to vector<16x8xbf16>
    %cst_69 = arith.constant dense<0.000000e+00> : vector<16x8xf32>
    %187 = tpu.matmul %185, %186, %cst_69 {dimension_numbers = #tpu.dot_dimension_numbers<[1], [0], [0], [1], [0, 0, 1, 1], [], []>} : vector<16x16xbf16>, vector<16x8xbf16>, vector<16x8xf32> -> vector<16x8xf32>
    %cst_70 = arith.constant 0.000000e+00 : f32
    %188 = vector.broadcast %cst_70 : f32 to vector<16x8xf32>
    %189 = arith.cmpf ogt, %187, %188 : vector<16x8xf32>
    %cst_71 = arith.constant 0.000000e+00 : f32
    %190 = vector.broadcast %cst_71 : f32 to vector<16x8xf32>
    %191 = arith.minimumf %187, %190 : vector<16x8xf32>
    %192 = math.exp %191 : vector<16x8xf32>
    %cst_72 = arith.constant 1.000000e+00 : f32
    %193 = vector.broadcast %cst_72 : f32 to vector<16x8xf32>
    %194 = arith.subf %192, %193 : vector<16x8xf32>
    %195 = arith.select %189, %187, %194 : vector<16x8xi1>, vector<16x8xf32>
    %196 = vector.extract_strided_slice %100 {offsets = [0, 24], sizes = [16, 8], strides = [1, 1]} : vector<16x32xf32> to vector<16x8xf32>
    %197 = arith.addf %195, %196 : vector<16x8xf32>
    %c0_73 = arith.constant 0 : index
    %c24_74 = arith.constant 24 : index
    %198 = vector.load %arg10[%c0_73, %c24_74] : memref<16x32xf32, #tpu.memory_space<vmem>>, vector<16x8xf32>
    tpu.vector_store %arg10[%c0_73, %c24_74], %197 {strides = array<i32>} : memref<16x32xf32, #tpu.memory_space<vmem>>, vector<16x8xf32>,
    %c0_75 = arith.constant 0 : index
    %c0_76 = arith.constant 0 : index
    %199 = vector.load %arg10[%c0_75, %c0_76] : memref<16x32xf32, #tpu.memory_space<vmem>>, vector<16x32xf32>
    %c0_77 = arith.constant 0 : index
    %c0_78 = arith.constant 0 : index
    %200 = vector.load %arg7[%c0_77, %c0_78] : memref<32x32xbf16, #tpu.memory_space<vmem>>, vector<32x32xbf16>
    %c0_79 = arith.constant 0 : index
    %c0_80 = arith.constant 0 : index
    %201 = vector.load %arg8[%c0_79, %c0_80] : memref<32x2xbf16, #tpu.memory_space<vmem>>, vector<32x2xbf16>
    %202 = arith.truncf %199 : vector<16x32xf32> to vector<16x32xbf16>
    %cst_81 = arith.constant dense<0.000000e+00> : vector<16x32xf32>
    %203 = tpu.matmul %202, %200, %cst_81 {dimension_numbers = #tpu.dot_dimension_numbers<[1], [0], [0], [1], [0, 0, 1, 1], [], []>} : vector<16x32xbf16>, vector<32x32xbf16>, vector<16x32xf32> -> vector<16x32xf32>
    %204 = arith.truncf %203 : vector<16x32xf32> to vector<16x32xbf16>
    %cst_82 = arith.constant dense<0.000000e+00> : vector<16x2xf32>
    %205 = tpu.matmul %204, %201, %cst_82 {dimension_numbers = #tpu.dot_dimension_numbers<[1], [0], [0], [1], [0, 0, 1, 1], [], []>} : vector<16x32xbf16>, vector<32x2xbf16>, vector<16x2xf32> -> vector<16x2xf32>
    %206 = tpu.iota {dimensions = array<i32: 0>} : vector<2x2xi32>
    %207 = tpu.iota {dimensions = array<i32: 1>} : vector<2x2xi32>
    %c0_i32_83 = arith.constant 0 : i32
    %208 = vector.broadcast %c0_i32_83 : i32 to vector<2x2xi32>
    %209 = arith.addi %206, %208 : vector<2x2xi32>
    %210 = arith.cmpi eq, %209, %207 : vector<2x2xi32>
    %211 = arith.extui %210 : vector<2x2xi1> to vector<2x2xi32>
    %212 = arith.sitofp %211 : vector<2x2xi32> to vector<2x2xf32>
    %cst_84 = arith.constant dense<0.000000e+00> : vector<2x16xf32>
    %213 = tpu.matmul %212, %205, %cst_84 {dimension_numbers = #tpu.dot_dimension_numbers<[1], [1], [0], [0], [0, 0, 1, 0], [], []>} : vector<2x2xf32>, vector<16x2xf32>, vector<2x16xf32> -> vector<2x16xf32>
    %214 = vector.extract_strided_slice %213 {offsets = [0, 0], sizes = [1, 16], strides = [1, 1]} : vector<2x16xf32> to vector<1x16xf32>
    %215 = vector.shape_cast %214 : vector<1x16xf32> to vector<1x16x1xf32>
    %216 = vector.extract_strided_slice %213 {offsets = [1, 0], sizes = [1, 16], strides = [1, 1]} : vector<2x16xf32> to vector<1x16xf32>
    %217 = vector.shape_cast %216 : vector<1x16xf32> to vector<1x1x16xf32>
    %218 = vector.broadcast %215 : vector<1x16x1xf32> to vector<1x16x16xf32>
    %219 = vector.broadcast %217 : vector<1x1x16xf32> to vector<1x16x16xf32>
    %220 = arith.addf %218, %219 : vector<1x16x16xf32>
    %cst_85 = arith.constant 2.000000e-01 : f32
    %221 = vector.broadcast %cst_85 : f32 to vector<1x16x16xf32>
    %222 = arith.mulf %221, %220 : vector<1x16x16xf32>
    %223 = arith.maximumf %220, %222 : vector<1x16x16xf32>
    %224 = vector.shape_cast %9 : vector<16x16xf32> to vector<1x16x16xf32>
    %225 = arith.addf %223, %224 : vector<1x16x16xf32>
    %cst_86 = arith.constant dense<0xFF800000> : vector<1x16xf32>
    %226 = vector.multi_reduction <maximumf>, %225, %cst_86 [2] : vector<1x16x16xf32> to vector<1x16xf32>
    %227 = vector.shape_cast %226 : vector<1x16xf32> to vector<1x16x1xf32>
    %228 = vector.broadcast %227 : vector<1x16x1xf32> to vector<1x16x16xf32>
    %229 = arith.subf %225, %228 : vector<1x16x16xf32>
    %230 = math.exp %229 : vector<1x16x16xf32>
    %cst_87 = arith.constant dense<0.000000e+00> : vector<1x16xf32>
    %231 = vector.multi_reduction <add>, %230, %cst_87 [2] : vector<1x16x16xf32> to vector<1x16xf32>
    %232 = vector.shape_cast %231 : vector<1x16xf32> to vector<1x16x1xf32>
    %233 = tpu.reciprocal %232 {approx = true} : vector<1x16x1xf32> -> vector<1x16x1xf32>
    %234 = vector.broadcast %233 : vector<1x16x1xf32> to vector<1x16x16xf32>
    %235 = arith.mulf %230, %234 : vector<1x16x16xf32>
    %236 = arith.truncf %235 : vector<1x16x16xf32> to vector<1x16x16xbf16>
    %237 = vector.shape_cast %236 : vector<1x16x16xbf16> to vector<16x16xbf16>
    %cst_88 = arith.constant dense<0.000000e+00> : vector<16x32xf32>
    %238 = tpu.matmul %237, %204, %cst_88 {dimension_numbers = #tpu.dot_dimension_numbers<[1], [0], [0], [1], [0, 0, 1, 1], [], []>} : vector<16x16xbf16>, vector<16x32xbf16>, vector<16x32xf32> -> vector<16x32xf32>
    %cst_89 = arith.constant 0.000000e+00 : f32
    %239 = vector.broadcast %cst_89 : f32 to vector<16x32xf32>
    %240 = arith.cmpf ogt, %238, %239 : vector<16x32xf32>
    %cst_90 = arith.constant 0.000000e+00 : f32
    %241 = vector.broadcast %cst_90 : f32 to vector<16x32xf32>
    %242 = arith.minimumf %238, %241 : vector<16x32xf32>
    %243 = math.exp %242 : vector<16x32xf32>
    %cst_91 = arith.constant 1.000000e+00 : f32
    %244 = vector.broadcast %cst_91 : f32 to vector<16x32xf32>
    %245 = arith.subf %243, %244 : vector<16x32xf32>
    %246 = arith.select %240, %238, %245 : vector<16x32xi1>, vector<16x32xf32>
    %247 = arith.addf %246, %1 : vector<16x32xf32>
    %c0_92 = arith.constant 0 : index
    %c0_93 = arith.constant 0 : index
    %c0_94 = arith.constant 0 : index
    %248 = vector.load %arg9[%c0_92, %c0_93, %c0_94] : memref<1x16x32xf32, #tpu.memory_space<vmem>>, vector<1x16x32xf32>
    %249 = vector.shape_cast %248 : vector<1x16x32xf32> to vector<16x32xf32>
    %250 = vector.shape_cast %247 : vector<16x32xf32> to vector<1x16x32xf32>
    tpu.vector_store %arg9[%c0_92, %c0_93, %c0_94], %250 {strides = array<i32>} : memref<1x16x32xf32, #tpu.memory_space<vmem>>, vector<1x16x32xf32>,
    return
  }
  func.func @transform_0(%arg0: i32) -> (i32, i32, i32) {
    %c0_i32 = arith.constant 0 : i32
    %c0_i32_0 = arith.constant 0 : i32
    %c0_i32_1 = arith.constant 0 : i32
    return %arg0, %c0_i32, %c0_i32_0 : i32, i32, i32
  }
  func.func @transform_1(%arg0: i32) -> (i32, i32, i32) {
    %c0_i32 = arith.constant 0 : i32
    %c0_i32_0 = arith.constant 0 : i32
    %c0_i32_1 = arith.constant 0 : i32
    return %arg0, %c0_i32, %c0_i32_0 : i32, i32, i32
  }
  func.func @transform_2(%arg0: i32) -> (i32, i32) {
    %c0_i32 = arith.constant 0 : i32
    %c0_i32_0 = arith.constant 0 : i32
    %c0_i32_1 = arith.constant 0 : i32
    return %c0_i32, %c0_i32_0 : i32, i32
  }
  func.func @transform_3(%arg0: i32) -> (i32, i32) {
    %c0_i32 = arith.constant 0 : i32
    %c0_i32_0 = arith.constant 0 : i32
    %c0_i32_1 = arith.constant 0 : i32
    return %c0_i32, %c0_i32_0 : i32, i32
  }
  func.func @transform_4(%arg0: i32) -> (i32, i32) {
    %c0_i32 = arith.constant 0 : i32
    %c0_i32_0 = arith.constant 0 : i32
    %c0_i32_1 = arith.constant 0 : i32
    return %c0_i32, %c0_i32_0 : i32, i32
  }
  func.func @transform_5(%arg0: i32) -> (i32, i32) {
    %c0_i32 = arith.constant 0 : i32
    %c0_i32_0 = arith.constant 0 : i32
    %c0_i32_1 = arith.constant 0 : i32
    return %c0_i32, %c0_i32_0 : i32, i32
  }
  func.func @transform_6(%arg0: i32) -> (i32, i32) {
    %c0_i32 = arith.constant 0 : i32
    %c0_i32_0 = arith.constant 0 : i32
    %c0_i32_1 = arith.constant 0 : i32
    return %c0_i32, %c0_i32_0 : i32, i32
  }
  func.func @transform_7(%arg0: i32) -> (i32, i32) {
    %c0_i32 = arith.constant 0 : i32
    %c0_i32_0 = arith.constant 0 : i32
    %c0_i32_1 = arith.constant 0 : i32
    return %c0_i32, %c0_i32_0 : i32, i32
  }
  func.func @transform_8(%arg0: i32) -> (i32, i32, i32) {
    %c0_i32 = arith.constant 0 : i32
    %c0_i32_0 = arith.constant 0 : i32
    %c0_i32_1 = arith.constant 0 : i32
    return %arg0, %c0_i32, %c0_i32_0 : i32, i32, i32
  }
}

</mosaic_0001>

<llo_original>
// kernel: tpu_custom_call.1
$region0: #{tpu_custom_call.1}
  #allocation0 [shape = 'u32[]', space=smem, size = 0x4, offset = 0x4, fixed_abs, tag = 'smem constant byte address 0x4 - core index']
  #allocation1 [shape = 'u32[144,128]{1,0:T(1,128)}', space=vmem, size = 0x12000, scoped, tag = 'internal scratch']
  #allocation2 [shape = 'f32[16,32]{1,0:T(8,128)}', space=vmem, size = 0x2000, scoped, tag = 'scratch operand']
  %s0 = inlined_call_operand.vmem [shape: f32[2,16,32], index: 0, kind: input, shape index: {}]
  %s1 = inlined_call_operand.hbm [shape: s8[2,16,16], index: 1, kind: input, shape index: {}]
  %s2 = inlined_call_operand.vmem [shape: bf16[32,32], index: 2, kind: input, shape index: {}]
  %s3 = inlined_call_operand.vmem [shape: bf16[32,8], index: 3, kind: input, shape index: {}]
  %s4 = inlined_call_operand.vmem [shape: bf16[32,32], index: 4, kind: input, shape index: {}]
  %s5 = inlined_call_operand.vmem [shape: bf16[32,8], index: 5, kind: input, shape index: {}]
  %s6 = inlined_call_operand.hbm [shape: bf16[32,32], index: 6, kind: input, shape index: {}]
  %s7 = inlined_call_operand.vmem [shape: bf16[32,2], index: 7, kind: input, shape index: {}]
  %s8 = inlined_call_operand.hbm [shape: f32[2,16,32], index: 8, kind: output, shape index: {}]
  %s9 = sld [smem:[#allocation0]]
  $region73: #{tpu_custom_call.1} parent=0
    _
  %s11 = ssub.s32 1, %s9
  %s12 = scalar_select 0, %s11, %s9
  $region1: #{tpu_custom_call.1} parent=0
    #allocation3 [shape = 'u8[4096]{0}', space=vmem, size = 0x1000, scoped, tag = 'input window, operand 1']
    #allocation4 [shape = 's32[2]{0}', space=sflag, size = 0x8, scoped, tag = 'scoped memory for tpu_custom_call.1']
    #allocation5 [shape = 's32[2]{0}', space=sflag, size = 0x8, scoped, tag = 'scoped memory for tpu_custom_call.1']
    #allocation6 [shape = 'u8[8192]{0}', space=vmem, size = 0x2000, scoped, tag = 'input window, operand 6, single buffered']
    #allocation7 [shape = 's32[1]{0}', space=sflag, size = 0x4, scoped, tag = 'scoped memory for tpu_custom_call.1']
    #allocation8 [shape = 'u8[16384]{0}', space=vmem, size = 0x4000, scoped, tag = 'output window, operand 0']
    %13 = vsyncpa [#allocation4], 0
    %s14 = scalar_lea.sflag [#allocation4], 1
    %15 = vsyncpa %s14, 0
    %16 = vsyncpa [#allocation7], 0
    %17 = vsyncpa [#allocation5], 0
    %s18 = scalar_lea.sflag [#allocation5], 1
    %19 = vsyncpa %s18, 0
    loop: start=0, step=1, limit=4
    $region2: #{tpu_custom_call.1} parent=1 // loop_pre_header
      _
    $region3: #{tpu_custom_call.1} parent=1 // loop_header
      %s21 = sphi 0, %s25
      %p22 = scmp.ge.s32.totalorder %s21, 4
      %s31 = sphi 0, %s33
      %s34 = sphi 0, %s31
      %s35 = sphi 0, %s34
      %s51 = sphi 0, %s35
      %s57 = sphi 0, %s59
      %s60 = sphi 0, %s57
      %s61 = sphi 0, %s60
      %s77 = sphi 0, %s61
      %s81 = sphi 0, %s81
      %s83 = sphi 0, %s81
      %s84 = sphi 0, %s83
      %s98 = sphi 0, %s84
      %s102 = sphi 0, %s102
      %s104 = sphi 0, %s102
      %s105 = sphi 0, %s104
      %s119 = sphi 0, %s105
      %s123 = sphi 0, %s123
      %s125 = sphi 0, %s123
      %s126 = sphi 0, %s125
      %s140 = sphi 0, %s126
      %s144 = sphi 0, %s144
      %s146 = sphi 0, %s144
      %s147 = sphi 0, %s146
      %s161 = sphi 0, %s147
      %s165 = sphi 0, %s165
      %s167 = sphi 0, %s165
      %s168 = sphi 0, %s167
      %s182 = sphi 0, %s168
      %s186 = sphi 0, %s186
      %s188 = sphi 0, %s186
      %s189 = sphi 0, %s188
      %s203 = sphi 0, %s189
      %s209 = sphi 0, %s211
      %s212 = sphi 0, %s209
      %s213 = sphi 0, %s212
      %s229 = sphi 0, %s213
    $region4: #{tpu_custom_call.1} parent=1 // loop_header_branch
      %24 = sbr.rel (%p22) target = $region8
    $region5: #{tpu_custom_call.1} parent=1 // loop_body
      %s26 = ssub.s32 %s21, 1
      %s27 = ssub.s32 %s21, 2
      %s28 = sadd.s32 %s21, 1
      %s29 = ssub.s32 %s21, %s28
      %p30 = scmp.eq.s32.totalorder %s29, 0
      %s32 = sadd.s32 %s31, 1
      %s33 = scalar_select %p30, %s31, %s32
      %p36 = pneg %p30
      %p37 = scmp.eq.s32.totalorder %s21, 1
      %p38 = por %p36, %p37
      %p39 = scmp.ne.s32.totalorder %s31, %s34
      %p40 = scmp.eq.s32.totalorder %s21, 0
      %p41 = por %p39, %p40
      %p42 = scmp.ne.s32.totalorder %s31, %s34
      %p43 = scmp.eq.s32.totalorder %s26, 1
      %p44 = por %p42, %p43
      %p45 = scmp.ne.s32.totalorder %s34, %s35
      %p46 = scmp.eq.s32.totalorder %s26, 0
      %p47 = por %p45, %p46
      %p48 = scmp.ne.s32.totalorder %s34, %s35
      %p49 = scmp.eq.s32.totalorder %s27, 1
      %p50 = por %p48, %p49
      %p52 = scmp.ne.s32.totalorder %s35, %s51
      %p53 = scmp.eq.s32.totalorder %s27, 0
      %p54 = por %p52, %p53
      %s55 = ssub.s32 %s21, %s28
      %p56 = scmp.eq.s32.totalorder %s55, 0
      %s58 = sadd.s32 %s57, 1
      %s59 = scalar_select %p56, %s57, %s58
      %p62 = pneg %p56
      %p63 = scmp.eq.s32.totalorder %s21, 1
      %p64 = por %p62, %p63
      %p65 = scmp.ne.s32.totalorder %s57, %s60
      %p66 = scmp.eq.s32.totalorder %s21, 0
      %p67 = por %p65, %p66
      %p68 = scmp.ne.s32.totalorder %s57, %s60
      %p69 = scmp.eq.s32.totalorder %s26, 1
      %p70 = por %p68, %p69
      %p71 = scmp.ne.s32.totalorder %s60, %s61
      %p72 = scmp.eq.s32.totalorder %s26, 0
      %p73 = por %p71, %p72
      %p74 = scmp.ne.s32.totalorder %s60, %s61
      %p75 = scmp.eq.s32.totalorder %s27, 1
      %p76 = por %p74, %p75
      %p78 = scmp.ne.s32.totalorder %s61, %s77
      %p79 = scmp.eq.s32.totalorder %s27, 0
      %p80 = por %p78, %p79
      %s82 = sadd.s32 %s81, 1
      %p85 = scmp.eq.s32.totalorder %s21, 1
      %p86 = scmp.ne.s32.totalorder %s81, %s83
      %p87 = scmp.eq.s32.totalorder %s21, 0
      %p88 = por %p86, %p87
      %p89 = scmp.ne.s32.totalorder %s81, %s83
      %p90 = scmp.eq.s32.totalorder %s26, 1
      %p91 = por %p89, %p90
      %p92 = scmp.ne.s32.totalorder %s83, %s84
      %p93 = scmp.eq.s32.totalorder %s26, 0
      %p94 = por %p92, %p93
      %p95 = scmp.ne.s32.totalorder %s83, %s84
      %p96 = scmp.eq.s32.totalorder %s27, 1
      %p97 = por %p95, %p96
      %p99 = scmp.ne.s32.totalorder %s84, %s98
      %p100 = scmp.eq.s32.totalorder %s27, 0
      %p101 = por %p99, %p100
      %s103 = sadd.s32 %s102, 1
      %p106 = scmp.eq.s32.totalorder %s21, 1
      %p107 = scmp.ne.s32.totalorder %s102, %s104
      %p108 = scmp.eq.s32.totalorder %s21, 0
      %p109 = por %p107, %p108
      %p110 = scmp.ne.s32.totalorder %s102, %s104
      %p111 = scmp.eq.s32.totalorder %s26, 1
      %p112 = por %p110, %p111
      %p113 = scmp.ne.s32.totalorder %s104, %s105
      %p114 = scmp.eq.s32.totalorder %s26, 0
      %p115 = por %p113, %p114
      %p116 = scmp.ne.s32.totalorder %s104, %s105
      %p117 = scmp.eq.s32.totalorder %s27, 1
      %p118 = por %p116, %p117
      %p120 = scmp.ne.s32.totalorder %s105, %s119
      %p121 = scmp.eq.s32.totalorder %s27, 0
      %p122 = por %p120, %p121
      %s124 = sadd.s32 %s123, 1
      %p127 = scmp.eq.s32.totalorder %s21, 1
      %p128 = scmp.ne.s32.totalorder %s123, %s125
      %p129 = scmp.eq.s32.totalorder %s21, 0
      %p130 = por %p128, %p129
      %p131 = scmp.ne.s32.totalorder %s123, %s125
      %p132 = scmp.eq.s32.totalorder %s26, 1
      %p133 = por %p131, %p132
      %p134 = scmp.ne.s32.totalorder %s125, %s126
      %p135 = scmp.eq.s32.totalorder %s26, 0
      %p136 = por %p134, %p135
      %p137 = scmp.ne.s32.totalorder %s125, %s126
      %p138 = scmp.eq.s32.totalorder %s27, 1
      %p139 = por %p137, %p138
      %p141 = scmp.ne.s32.totalorder %s126, %s140
      %p142 = scmp.eq.s32.totalorder %s27, 0
      %p143 = por %p141, %p142
      %s145 = sadd.s32 %s144, 1
      %p148 = scmp.eq.s32.totalorder %s21, 1
      %p149 = scmp.ne.s32.totalorder %s144, %s146
      %p150 = scmp.eq.s32.totalorder %s21, 0
      %p151 = por %p149, %p150
      %p152 = scmp.ne.s32.totalorder %s144, %s146
      %p153 = scmp.eq.s32.totalorder %s26, 1
      %p154 = por %p152, %p153
      %p155 = scmp.ne.s32.totalorder %s146, %s147
      %p156 = scmp.eq.s32.totalorder %s26, 0
      %p157 = por %p155, %p156
      %p158 = scmp.ne.s32.totalorder %s146, %s147
      %p159 = scmp.eq.s32.totalorder %s27, 1
      %p160 = por %p158, %p159
      %p162 = scmp.ne.s32.totalorder %s147, %s161
      %p163 = scmp.eq.s32.totalorder %s27, 0
      %p164 = por %p162, %p163
      %s166 = sadd.s32 %s165, 1
      %p169 = scmp.eq.s32.totalorder %s21, 1
      %p170 = scmp.ne.s32.totalorder %s165, %s167
      %p171 = scmp.eq.s32.totalorder %s21, 0
      %p172 = por %p170, %p171
      %p173 = scmp.ne.s32.totalorder %s165, %s167
      %p174 = scmp.eq.s32.totalorder %s26, 1
      %p175 = por %p173, %p174
      %p176 = scmp.ne.s32.totalorder %s167, %s168
      %p177 = scmp.eq.s32.totalorder %s26, 0
      %p178 = por %p176, %p177
      %p179 = scmp.ne.s32.totalorder %s167, %s168
      %p180 = scmp.eq.s32.totalorder %s27, 1
      %p181 = por %p179, %p180
      %p183 = scmp.ne.s32.totalorder %s168, %s182
      %p184 = scmp.eq.s32.totalorder %s27, 0
      %p185 = por %p183, %p184
      %s187 = sadd.s32 %s186, 1
      %p190 = scmp.eq.s32.totalorder %s21, 1
      %p191 = scmp.ne.s32.totalorder %s186, %s188
      %p192 = scmp.eq.s32.totalorder %s21, 0
      %p193 = por %p191, %p192
      %p194 = scmp.ne.s32.totalorder %s186, %s188
      %p195 = scmp.eq.s32.totalorder %s26, 1
      %p196 = por %p194, %p195
      %p197 = scmp.ne.s32.totalorder %s188, %s189
      %p198 = scmp.eq.s32.totalorder %s26, 0
      %p199 = por %p197, %p198
      %p200 = scmp.ne.s32.totalorder %s188, %s189
      %p201 = scmp.eq.s32.totalorder %s27, 1
      %p202 = por %p200, %p201
      %p204 = scmp.ne.s32.totalorder %s189, %s203
      %p205 = scmp.eq.s32.totalorder %s27, 0
      %p206 = por %p204, %p205
      %s207 = ssub.s32 %s21, %s28
      %p208 = scmp.eq.s32.totalorder %s207, 0
      %s210 = sadd.s32 %s209, 1
      %s211 = scalar_select %p208, %s209, %s210
      %p214 = pneg %p208
      %p215 = scmp.eq.s32.totalorder %s21, 1
      %p216 = por %p214, %p215
      %p217 = scmp.ne.s32.totalorder %s209, %s212
      %p218 = scmp.eq.s32.totalorder %s21, 0
      %p219 = por %p217, %p218
      %p220 = scmp.ne.s32.totalorder %s209, %s212
      %p221 = scmp.eq.s32.totalorder %s26, 1
      %p222 = por %p220, %p221
      %p223 = scmp.ne.s32.totalorder %s212, %s213
      %p224 = scmp.eq.s32.totalorder %s26, 0
      %p225 = por %p223, %p224
      %p226 = scmp.ne.s32.totalorder %s212, %s213
      %p227 = scmp.eq.s32.totalorder %s27, 1
      %p228 = por %p226, %p227
      %p230 = scmp.ne.s32.totalorder %s213, %s229
      %p231 = scmp.eq.s32.totalorder %s27, 0
      %p232 = por %p230, %p231
      %p233 = scmp.le.s32.totalorder 1, %s21
      %p234 = scmp.lt.s32.totalorder %s21, 3
      %p235 = pnand %p233, %p234
      %p236 = pneg %p235
      // Predicated region
      $region9: #{tpu_custom_call.1} parent=5 // pred_check
        _
      $region10: #{tpu_custom_call.1} parent=5 // pred_check_branch
        %238 = sbr.rel (%p235) target = $region12
      $region11: #{tpu_custom_call.1} parent=5 // pred_region
        %s239 = ssub.s32 %s21, 1
        // Predicated region
        $region13: #{tpu_custom_call.1} parent=11 // pred_check
          %p240 = pneg %p94
        $region14: #{tpu_custom_call.1} parent=11 // pred_check_branch
          %242 = sbr.rel (%p240) target = $region16
        $region15: #{tpu_custom_call.1} parent=11 // pred_region
          _
        $region16: #{tpu_custom_call.1} parent=11 // pred_fallthru
          _
        // Predicated region
        $region17: #{tpu_custom_call.1} parent=11 // pred_check
          %p243 = pneg %p115
        $region18: #{tpu_custom_call.1} parent=11 // pred_check_branch
          %245 = sbr.rel (%p243) target = $region20
        $region19: #{tpu_custom_call.1} parent=11 // pred_region
          _
        $region20: #{tpu_custom_call.1} parent=11 // pred_fallthru
          _
        // Predicated region
        $region21: #{tpu_custom_call.1} parent=11 // pred_check
          %p246 = pneg %p136
        $region22: #{tpu_custom_call.1} parent=11 // pred_check_branch
          %248 = sbr.rel (%p246) target = $region24
        $region23: #{tpu_custom_call.1} parent=11 // pred_region
          _
        $region24: #{tpu_custom_call.1} parent=11 // pred_fallthru
          _
        // Predicated region
        $region25: #{tpu_custom_call.1} parent=11 // pred_check
          %p249 = pneg %p157
        $region26: #{tpu_custom_call.1} parent=11 // pred_check_branch
          %251 = sbr.rel (%p249) target = $region28
        $region27: #{tpu_custom_call.1} parent=11 // pred_region
          _
        $region28: #{tpu_custom_call.1} parent=11 // pred_fallthru
          _
        // Predicated region
        $region29: #{tpu_custom_call.1} parent=11 // pred_check
          %p252 = pneg %p178
        $region30: #{tpu_custom_call.1} parent=11 // pred_check_branch
          %254 = sbr.rel (%p252) target = $region32
        $region31: #{tpu_custom_call.1} parent=11 // pred_region
          %s256 = ssub.s32 256, 256
          %257 = vsyncadd [#allocation7], %s256
          %s258 = sshll.u32 [#allocation6], 4
          %s259 = int_to_ptr.vmem [resolvable:$true] %s258
          %264 = dma.hbm_to_vmem [thread:$0]  %s6, 256, %s259, [#allocation7], 64, 64, 4
        $region32: #{tpu_custom_call.1} parent=11 // pred_fallthru
          _
        // Predicated region
        $region33: #{tpu_custom_call.1} parent=11 // pred_check
          %p265 = pneg %p199
        $region34: #{tpu_custom_call.1} parent=11 // pred_check_branch
          %267 = sbr.rel (%p265) target = $region36
        $region35: #{tpu_custom_call.1} parent=11 // pred_region
          _
        $region36: #{tpu_custom_call.1} parent=11 // pred_fallthru
          _
      $region12: #{tpu_custom_call.1} parent=5 // pred_fallthru
        _
      %p268 = scmp.lt.s32.totalorder %s21, 2
      // Predicated region
      $region37: #{tpu_custom_call.1} parent=5 // pred_check
        %p269 = pneg %p268
      $region38: #{tpu_custom_call.1} parent=5 // pred_check_branch
        %271 = sbr.rel (%p269) target = $region40
      $region39: #{tpu_custom_call.1} parent=5 // pred_region
        // Predicated region
        $region41: #{tpu_custom_call.1} parent=39 // pred_check
          %p272 = pneg %p41
        $region42: #{tpu_custom_call.1} parent=39 // pred_check_branch
          %274 = sbr.rel (%p272) target = $region44
        $region43: #{tpu_custom_call.1} parent=39 // pred_region
          %p275 = scmp.lt.s32.totalorder %s21, 1
          %s276 = scalar_select %p275, %s21, 1
          %s277 = smul.addr %s276, 2
          %s278 = smul.addr %s277, 8
          %s279 = scalar_lea.vmem %s0, %s278
        $region44: #{tpu_custom_call.1} parent=39 // pred_fallthru
          _
        // Predicated region
        $region45: #{tpu_custom_call.1} parent=39 // pred_check
          %p280 = pneg %p67
        $region46: #{tpu_custom_call.1} parent=39 // pred_check_branch
          %282 = sbr.rel (%p280) target = $region48
        $region47: #{tpu_custom_call.1} parent=39 // pred_region
          %s283 = sand.u32 %s57, 1
          %s284 = scalar_lea.sflag [#allocation4], %s283
          %s285 = sand.u32 %s57, 1
          %s286 = smul.addr %s285, 4
          %s287 = scalar_lea.vmem [#allocation3], %s286
          %s289 = ssub.s32 64, 64
          %290 = vsyncadd %s284, %s289
          %s291 = smul.addr %s21, 2
          %s292 = smul.addr %s291, 32
          %s293 = scalar_lea.hbm %s1, %s292
          %s294 = sshll.u32 %s287, 4
          %s295 = int_to_ptr.vmem [resolvable:$true] %s294
          %300 = dma.hbm_to_vmem [thread:$0]  %s293, 64, %s295, %s284, 32, 32, 2
        $region48: #{tpu_custom_call.1} parent=39 // pred_fallthru
          _
      $region40: #{tpu_custom_call.1} parent=5 // pred_fallthru
        _
      %p301 = scmp.le.s32.totalorder 1, %s21
      %p302 = scmp.lt.s32.totalorder %s21, 3
      %p303 = pnand %p301, %p302
      %p304 = pneg %p303
      // Predicated region
      $region49: #{tpu_custom_call.1} parent=5 // pred_check
        _
      $region50: #{tpu_custom_call.1} parent=5 // pred_check_branch
        %306 = sbr.rel (%p303) target = $region52
      $region51: #{tpu_custom_call.1} parent=5 // pred_region
        %s307 = ssub.s32 %s21, 1
        %s308 = sand.u32 %s60, 1
        %s309 = scalar_lea.sflag [#allocation4], %s308
        %s310 = sand.u32 %s60, 1
        %s311 = smul.addr %s310, 4
        %s312 = scalar_lea.vmem [#allocation3], %s311
        // Predicated region
        $region53: #{tpu_custom_call.1} parent=51 // pred_check
          %p313 = pneg %p73
        $region54: #{tpu_custom_call.1} parent=51 // pred_check_branch
          %315 = sbr.rel (%p313) target = $region56
        $region55: #{tpu_custom_call.1} parent=51 // pred_region
          %316 = dma.done %s309, 64
        $region56: #{tpu_custom_call.1} parent=51 // pred_fallthru
          _
        // Predicated region
        $region57: #{tpu_custom_call.1} parent=51 // pred_check
          %p317 = pneg %p178
        $region58: #{tpu_custom_call.1} parent=51 // pred_check_branch
          %319 = sbr.rel (%p317) target = $region60
        $region59: #{tpu_custom_call.1} parent=51 // pred_region
          %320 = dma.done [#allocation7], 256
        $region60: #{tpu_custom_call.1} parent=51 // pred_fallthru
          _
        %p321 = scmp.lt.s32.totalorder %s26, 1
        %s322 = scalar_select %p321, %s26, 1
        %s323 = smul.addr %s322, 2
        %s324 = smul.addr %s323, 8
        %s325 = scalar_lea.vmem %s0, %s324
        %p326 = pneg %p47
        %p327 = pneg %p44
        %s328 = sand.u32 %s60, 1
        %s329 = scalar_lea.sflag [#allocation4], %s328
        %s330 = sand.u32 %s60, 1
        %s331 = smul.addr %s330, 4
        %s332 = scalar_lea.vmem [#allocation3], %s331
        %p333 = pneg %p73
        %p334 = pneg %p70
        %p335 = pneg %p94
        %p336 = pneg %p91
        %p337 = pneg %p115
        %p338 = pneg %p112
        %p339 = pneg %p136
        %p340 = pneg %p133
        %p341 = pneg %p157
        %p342 = pneg %p154
        %p343 = pneg %p178
        %p344 = pneg %p175
        %p345 = pneg %p199
        %p346 = pneg %p196
        %p347 = pneg %p225
        %p348 = pneg %p222
        %s349 = sand.u32 %s212, 1
        %s350 = scalar_lea.sflag [#allocation5], %s349
        %s351 = sand.u32 %s212, 1
        %s352 = smul.addr %s351, 16
        %s353 = scalar_lea.vmem [#allocation8], %s352
        %p354 = scmp.lt.s32.totalorder %s26, 1
        %s355 = scalar_select %p354, %s26, 1
        %s356 = smul.addr %s355, 2
        %s357 = smul.addr %s356, 8
        %s358 = scalar_lea.vmem %s0, %s357
        %v360 = vld [vmem:[%s358] sm:$0xff]
        %v361 = vld [vmem:[%s358 + $0x8] sm:$0xff]
        %v362 = vld [vmem:[%s312] sm:$0x3]
        %v363 = vld [vmem:[%s312 + $0x2] sm:$0x3]
        %v364 = vunpack.c.0.s8 %v362
        %v365 = vunpack.c.0.s8 %v363
        %v366 = vcvt.s32.f32 %v364
        %v367 = vcvt.s32.f32 %v365
        %vm368 = vcmp.gt.f32.partialorder %v366, 0.0
        %vm369 = vcmp.gt.f32.partialorder %v367, 0.0
        %v370 = vsel %vm368, 0.0, -9e+15
        %v371 = vsel %vm369, 0.0, -9e+15
        %v372 = vld [vmem:[%s2] sm:$0xf]
        %v373 = vld [vmem:[%s2 + $0x4] sm:$0xf]
        %v374 = vld [vmem:[%s2 + $0x8] sm:$0xf]
        %v375 = vld [vmem:[%s2 + $0xc] sm:$0xf]
        %v376 = vld [vmem:[%s3] sm:$0xf]
        %v377 = vld [vmem:[%s3 + $0x4] sm:$0xf]
        %v378 = vld [vmem:[%s3 + $0x8] sm:$0xf]
        %v379 = vld [vmem:[%s3 + $0xc] sm:$0xf]
        %v380 = vpack.c.bf16 %v361, %v360
        %v385 = vunpack.c.l.b16 %v372
        %v386 = vunpack.c.l.b16 %v373
        %v387 = vunpack.c.l.b16 %v374
        %v388 = vunpack.c.l.b16 %v375
        %v389 = vpack.c.b16 %v386, %v385
        %v390 = vpack.c.b16 %v388, %v387
        %vm393 = vcmask 261120
        %v395 = vsel %vm393, %v380, 0
        %397 = vmatprep.subr.bf16.mxu0 0
        %398 = vmatpush1.bf16.msra.mxu0 0
        %399 = vmatprep.subr.bf16.mxu0 0
        %400 = vmatpush1.bf16.msra.mxu0 0
        %401 = vmatprep.subr.bf16.mxu0 0
        %402 = vmatpush1.bf16.msra.mxu0 0
        %403 = vmatprep.subr.bf16.mxu0 0
        %404 = vmatpush1.bf16.msra.mxu0 0
        %405 = vmatprep.subr.bf16.mxu0 0
        %406 = vmatpush1.bf16.msra.mxu0 0
        %407 = vmatprep.subr.bf16.mxu0 0
        %408 = vmatpush1.bf16.msra.mxu0 0
        %409 = vmatprep.subr.bf16.mxu0 0
        %410 = vmatpush1.bf16.msra.mxu0 %v390
        %411 = vmatprep.subr.bf16.mxu0 0
        %412 = vmatpush1.bf16.msra.mxu0 %v389
        %413 = vmatprep.subr.bf16.mxu0 0
        %414 = vmatpush2.bf16.msra.mxu0 0
        %415 = vmatprep.subr.bf16.mxu0 0
        %416 = vmatpush2.bf16.msra.mxu0 0
        %417 = vmatprep.subr.bf16.mxu0 0
        %418 = vmatpush2.bf16.msra.mxu0 0
        %419 = vmatprep.subr.bf16.mxu0 0
        %420 = vmatpush2.bf16.msra.mxu0 0
        %421 = vmatprep.subr.bf16.mxu0 0
        %422 = vmatpush2.bf16.msra.mxu0 0
        %423 = vmatprep.subr.bf16.mxu0 0
        %424 = vmatpush2.bf16.msra.mxu0 0
        %425 = vmatprep.subr.bf16.mxu0 0
        %426 = vmatpush2.bf16.msra.mxu0 0
        %427 = vmatprep.subr.bf16.mxu0 0
        %428 = vmatpush2.bf16.msra.mxu0 0
        %429 = vmatprep.mubr.bf16.mxu0 0
        %430 = vmatmul.mubr.bf16.gmra.mxu0 %v395
        %v431 = vpop.f32.mrf.mxu0
        %v432 = vadd.f32 0.0, %v431
        %v433 = vpop.f32.mrf.mxu0
        %v434 = vpop.f32.mrf.mxu0
        %v435 = vadd.f32 0.0, %v434
        %v436 = vpop.f32.mrf.mxu0
        %437 = vdwg.mxu0
        %v438 = vpack.c.bf16 %v435, %v432
        %v443 = vunpack.c.l.b16 %v376
        %v444 = vunpack.c.l.b16 %v377
        %v445 = vunpack.c.l.b16 %v378
        %v446 = vunpack.c.l.b16 %v379
        %v447 = vpack.c.b16 %v444, %v443
        %v448 = vpack.c.b16 %v446, %v445
        %v452 = vsel %vm393, %v438, 0
        %454 = vmatprep.subr.bf16.mxu0 0
        %455 = vmatpush1.bf16.msra.mxu0 0
        %456 = vmatprep.subr.bf16.mxu0 0
        %457 = vmatpush1.bf16.msra.mxu0 0
        %458 = vmatprep.subr.bf16.mxu0 0
        %459 = vmatpush1.bf16.msra.mxu0 0
        %460 = vmatprep.subr.bf16.mxu0 0
        %461 = vmatpush1.bf16.msra.mxu0 0
        %462 = vmatprep.subr.bf16.mxu0 0
        %463 = vmatpush1.bf16.msra.mxu0 0
        %464 = vmatprep.subr.bf16.mxu0 0
        %465 = vmatpush1.bf16.msra.mxu0 0
        %466 = vmatprep.subr.bf16.mxu0 0
        %467 = vmatpush1.bf16.msra.mxu0 %v448
        %468 = vmatprep.subr.bf16.mxu0 0
        %469 = vmatpush1.bf16.msra.mxu0 %v447
        %470 = vmatprep.subr.bf16.mxu0 0
        %471 = vmatpush2.bf16.msra.mxu0 0
        %472 = vmatprep.subr.bf16.mxu0 0
        %473 = vmatpush2.bf16.msra.mxu0 0
        %474 = vmatprep.subr.bf16.mxu0 0
        %475 = vmatpush2.bf16.msra.mxu0 0
        %476 = vmatprep.subr.bf16.mxu0 0
        %477 = vmatpush2.bf16.msra.mxu0 0
        %478 = vmatprep.subr.bf16.mxu0 0
        %479 = vmatpush2.bf16.msra.mxu0 0
        %480 = vmatprep.subr.bf16.mxu0 0
        %481 = vmatpush2.bf16.msra.mxu0 0
        %482 = vmatprep.subr.bf16.mxu0 0
        %483 = vmatpush2.bf16.msra.mxu0 0
        %484 = vmatprep.subr.bf16.mxu0 0
        %485 = vmatpush2.bf16.msra.mxu0 0
        %486 = vmatprep.mubr.bf16.mxu0 0
        %487 = vmatmul.mubr.bf16.gmra.mxu0 %v452
        %v488 = vpop.f32.mrf.mxu0
        %v489 = vadd.f32 0.0, %v488
        %v490 = vpop.f32.mrf.mxu0
        %v491 = vpop.f32.mrf.mxu0
        %v492 = vadd.f32 0.0, %v491
        %v493 = vpop.f32.mrf.mxu0
        %494 = vdwg.mxu0
        %v495 = vlaneseq
        %v496 = vshrl.u32 %v495, 7
        %v497 = vlaneseq
        %v498 = vand.u32 %v497, 127
        %vm499 = vcmp.eq.s32.totalorder %v496, %v498
        %v500 = vsel %vm499, 1, 0
        %v501 = vcvt.s32.f32 %v500
        %vm502 = vcmask 64512
        %v504 = vsel %vm502, %v501, 0
        %v507 = vsel %vm502, %v489, 0
        %v510 = vsel %vm502, %v492, 0
        %512 = vmatprep.subr.mxu0 0.0
        %513 = vmatpush1.xpose.msra.mxu0 0.0
        %514 = vmatprep.subr.mxu0 0.0
        %515 = vmatpush1.xpose.msra.mxu0 0.0
        %516 = vmatprep.subr.mxu0 0.0
        %517 = vmatpush1.xpose.msra.mxu0 0.0
        %518 = vmatprep.subr.mxu0 0.0
        %519 = vmatpush1.xpose.msra.mxu0 0.0
        %520 = vmatprep.subr.mxu0 0.0
        %521 = vmatpush1.xpose.msra.mxu0 0.0
        %522 = vmatprep.subr.mxu0 0.0
        %523 = vmatpush1.xpose.msra.mxu0 0.0
        %524 = vmatprep.subr.mxu0 0.0
        %525 = vmatpush1.xpose.msra.mxu0 0.0
        %526 = vmatprep.subr.mxu0 0.0
        %527 = vmatpush1.xpose.msra.mxu0 0.0
        %528 = vmatprep.subr.mxu0 0.0
        %529 = vmatpush1.xpose.msra.mxu0 0.0
        %530 = vmatprep.subr.mxu0 0.0
        %531 = vmatpush1.xpose.msra.mxu0 0.0
        %532 = vmatprep.subr.mxu0 0.0
        %533 = vmatpush1.xpose.msra.mxu0 0.0
        %534 = vmatprep.subr.mxu0 0.0
        %535 = vmatpush1.xpose.msra.mxu0 0.0
        %536 = vmatprep.subr.mxu0 0.0
        %537 = vmatpush1.xpose.msra.mxu0 0.0
        %538 = vmatprep.subr.mxu0 0.0
        %539 = vmatpush1.xpose.msra.mxu0 0.0
        %540 = vmatprep.subr.mxu0 0.0
        %541 = vmatpush1.xpose.msra.mxu0 %v510
        %542 = vmatprep.subr.mxu0 0.0
        %543 = vmatpush1.xpose.msra.mxu0 %v507
        %544 = vmatprep.subr.mxu0 0.0
        %545 = vmatpush2.xpose.msra.mxu0 0.0
        %546 = vmatprep.subr.mxu0 0.0
        %547 = vmatpush2.xpose.msra.mxu0 0.0
        %548 = vmatprep.subr.mxu0 0.0
        %549 = vmatpush2.xpose.msra.mxu0 0.0
        %550 = vmatprep.subr.mxu0 0.0
        %551 = vmatpush2.xpose.msra.mxu0 0.0
        %552 = vmatprep.subr.mxu0 0.0
        %553 = vmatpush2.xpose.msra.mxu0 0.0
        %554 = vmatprep.subr.mxu0 0.0
        %555 = vmatpush2.xpose.msra.mxu0 0.0
        %556 = vmatprep.subr.mxu0 0.0
        %557 = vmatpush2.xpose.msra.mxu0 0.0
        %558 = vmatprep.subr.mxu0 0.0
        %559 = vmatpush2.xpose.msra.mxu0 0.0
        %560 = vmatprep.subr.mxu0 0.0
        %561 = vmatpush2.xpose.msra.mxu0 0.0
        %562 = vmatprep.subr.mxu0 0.0
        %563 = vmatpush2.xpose.msra.mxu0 0.0
        %564 = vmatprep.subr.mxu0 0.0
        %565 = vmatpush2.xpose.msra.mxu0 0.0
        %566 = vmatprep.subr.mxu0 0.0
        %567 = vmatpush2.xpose.msra.mxu0 0.0
        %568 = vmatprep.subr.mxu0 0.0
        %569 = vmatpush2.xpose.msra.mxu0 0.0
        %570 = vmatprep.subr.mxu0 0.0
        %571 = vmatpush2.xpose.msra.mxu0 0.0
        %572 = vmatprep.subr.mxu0 0.0
        %573 = vmatpush2.xpose.msra.mxu0 0.0
        %574 = vmatprep.subr.mxu0 0.0
        %575 = vmatpush2.xpose.msra.mxu0 0.0
        %576 = vmatprep.mubr.f32.mxu0 0.0
        %577 = vmatmul.mubr.f32.gmra.mxu0 %v504
        %v578 = vpop.f32.mrf.mxu0
        %v579 = vadd.f32 0.0, %v578
        %v580 = vpop.f32.mrf.mxu0
        %581 = vdwg.mxu0
        %v582 = vlaneseq
        %v583 = vshrl.u32 %v582, 7
        %v584 = vsub.s32 0, %v583
        %v585 = vrot.slane %v579, %v584
        %587 = vbcast.lane.b32.xlu0 %v585, 256
        %v588 = vpop.permute.xlu0 %587
        %s590 = sor.u32 256, 8
        %591 = vbcast.lane.b32.xlu0 %v585, %s590
        %v592 = vpop.permute.xlu0 %591
        %v593 = vlaneseq
        %v594 = vshrl.u32 %v593, 7
        %v595 = vsub.s32 1, %v594
        %v596 = vrot.slane %v579, %v595
        %598 = vbcast.lane.b32.xlu0 %v596, 256
        %v599 = vpop.permute.xlu0 %598
        %s601 = sor.u32 256, 8
        %602 = vbcast.lane.b32.xlu0 %v596, %s601
        %v603 = vpop.permute.xlu0 %602
        %v604 = vlaneseq
        %v605 = vshrl.u32 %v604, 7
        %v606 = vsub.s32 2, %v605
        %v607 = vrot.slane %v579, %v606
        %609 = vbcast.lane.b32.xlu0 %v607, 256
        %v610 = vpop.permute.xlu0 %609
        %s612 = sor.u32 256, 8
        %613 = vbcast.lane.b32.xlu0 %v607, %s612
        %v614 = vpop.permute.xlu0 %613
        %v615 = vlaneseq
        %v616 = vshrl.u32 %v615, 7
        %v617 = vsub.s32 3, %v616
        %v618 = vrot.slane %v579, %v617
        %620 = vbcast.lane.b32.xlu0 %v618, 256
        %v621 = vpop.permute.xlu0 %620
        %s623 = sor.u32 256, 8
        %624 = vbcast.lane.b32.xlu0 %v618, %s623
        %v625 = vpop.permute.xlu0 %624
        %v627 = vcombine.high %v579, %v579
        %v629 = vunpack.c.l.s4 1966171168
        %v630 = vunpack.c.0.s8 %v629
        %v631 = vlaneseq
        %v632 = vshrl.u32 %v631, 7
        %v633 = vsub.s32 %v630, %v632
        %v634 = vrot.slane %v627, %v633
        %v635 = vcombine.high %v634, %v634
        %v637 = vunpack.c.l.s4 1966171168
        %v638 = vunpack.c.0.s8 %v637
        %v639 = vlaneseq
        %v640 = vshrl.u32 %v639, 7
        %v641 = vsub.s32 %v638, %v640
        %v642 = vrot.slane %v634, %v641
        %v644 = vunpack.c.l.s4 1966171168
        %v645 = vunpack.c.0.s8 %v644
        %v646 = vlaneseq
        %v647 = vshrl.u32 %v646, 7
        %v648 = vsub.s32 %v645, %v647
        %v649 = vrot.slane %v635, %v648
        %v650 = vcombine.high %v642, %v642
        %v651 = vcombine.high %v649, %v649
        %v652 = vlaneseq
        %v653 = vshrl.u32 %v652, 7
        %v654 = vsub.s32 0, %v653
        %v655 = vrot.slane %v642, %v654
        %v656 = vlaneseq
        %v657 = vshrl.u32 %v656, 7
        %v658 = vsub.s32 0, %v657
        %v659 = vrot.slane %v649, %v658
        %v660 = vlaneseq
        %v661 = vshrl.u32 %v660, 7
        %v662 = vsub.s32 0, %v661
        %v663 = vrot.slane %v650, %v662
        %v664 = vlaneseq
        %v665 = vshrl.u32 %v664, 7
        %v666 = vsub.s32 0, %v665
        %v667 = vrot.slane %v651, %v666
        %v672 = vadd.f32 %v588, %v655
        %v673 = vadd.f32 %v592, %v655
        %v674 = vadd.f32 %v599, %v659
        %v675 = vadd.f32 %v603, %v659
        %v676 = vadd.f32 %v610, %v663
        %v677 = vadd.f32 %v614, %v663
        %v678 = vadd.f32 %v621, %v667
        %v679 = vadd.f32 %v625, %v667
        %v680 = vmul.f32 %v672, 0.2
        %v681 = vmul.f32 %v673, 0.2
        %v682 = vmul.f32 %v674, 0.2
        %v683 = vmul.f32 %v675, 0.2
        %v684 = vmul.f32 %v676, 0.2
        %v685 = vmul.f32 %v677, 0.2
        %v686 = vmul.f32 %v678, 0.2
        %v687 = vmul.f32 %v679, 0.2
        %v688 = vmax.f32 %v672, %v680
        %v689 = vmax.f32 %v673, %v681
        %v690 = vmax.f32 %v674, %v682
        %v691 = vmax.f32 %v675, %v683
        %v692 = vmax.f32 %v676, %v684
        %v693 = vmax.f32 %v677, %v685
        %v694 = vmax.f32 %v678, %v686
        %v695 = vmax.f32 %v679, %v687
        %v696 = vadd.f32 %v688, %v370
        %v697 = vadd.f32 %v689, %v371
        %v698 = vadd.f32 %v690, %v370
        %v699 = vadd.f32 %v691, %v371
        %v700 = vadd.f32 %v692, %v370
        %v701 = vadd.f32 %v693, %v371
        %v702 = vadd.f32 %v694, %v370
        %v703 = vadd.f32 %v695, %v371
        %vm704 = vcmask 130048
        %v705 = vsel %vm704, %v696, -inf
        %706 = vmax.xlane.f32.xlu0 %v705
        %v707 = vpop.xlane.xlu0 %706
        %v708 = vsel %vm704, %v697, -inf
        %709 = vmax.xlane.f32.xlu0 %v708
        %v710 = vpop.xlane.xlu0 %709
        %v711 = vsel %vm704, %v698, -inf
        %712 = vmax.xlane.f32.xlu0 %v711
        %v713 = vpop.xlane.xlu0 %712
        %v714 = vsel %vm704, %v699, -inf
        %715 = vmax.xlane.f32.xlu0 %v714
        %v716 = vpop.xlane.xlu0 %715
        %v717 = vsel %vm704, %v700, -inf
        %718 = vmax.xlane.f32.xlu0 %v717
        %v719 = vpop.xlane.xlu0 %718
        %v720 = vsel %vm704, %v701, -inf
        %721 = vmax.xlane.f32.xlu0 %v720
        %v722 = vpop.xlane.xlu0 %721
        %v723 = vsel %vm704, %v702, -inf
        %724 = vmax.xlane.f32.xlu0 %v723
        %v725 = vpop.xlane.xlu0 %724
        %v726 = vsel %vm704, %v703, -inf
        %727 = vmax.xlane.f32.xlu0 %v726
        %v728 = vpop.xlane.xlu0 %727
        %v729 = vsub.f32 %v696, %v707
        %v730 = vsub.f32 %v697, %v710
        %v731 = vsub.f32 %v698, %v713
        %v732 = vsub.f32 %v699, %v716
        %v733 = vsub.f32 %v700, %v719
        %v734 = vsub.f32 %v701, %v722
        %v735 = vsub.f32 %v702, %v725
        %v736 = vsub.f32 %v703, %v728
        %v737 = vmul.f32 %v729, 1.442695
        %v738 = vpow.pop %v737
        %v739 = vmul.f32 %v730, 1.442695
        %v740 = vpow.pop %v739
        %v741 = vmul.f32 %v731, 1.442695
        %v742 = vpow.pop %v741
        %v743 = vmul.f32 %v732, 1.442695
        %v744 = vpow.pop %v743
        %v745 = vmul.f32 %v733, 1.442695
        %v746 = vpow.pop %v745
        %v747 = vmul.f32 %v734, 1.442695
        %v748 = vpow.pop %v747
        %v749 = vmul.f32 %v735, 1.442695
        %v750 = vpow.pop %v749
        %v751 = vmul.f32 %v736, 1.442695
        %v752 = vpow.pop %v751
        %v753 = vsel %vm704, %v738, 0.0
        %754 = vadd.xlane.f32.xlu0 %v753
        %v755 = vpop.xlane.xlu0 %754
        %v756 = vsel %vm704, %v740, 0.0
        %757 = vadd.xlane.f32.xlu0 %v756
        %v758 = vpop.xlane.xlu0 %757
        %v759 = vsel %vm704, %v742, 0.0
        %760 = vadd.xlane.f32.xlu0 %v759
        %v761 = vpop.xlane.xlu0 %760
        %v762 = vsel %vm704, %v744, 0.0
        %763 = vadd.xlane.f32.xlu0 %v762
        %v764 = vpop.xlane.xlu0 %763
        %v765 = vsel %vm704, %v746, 0.0
        %766 = vadd.xlane.f32.xlu0 %v765
        %v767 = vpop.xlane.xlu0 %766
        %v768 = vsel %vm704, %v748, 0.0
        %769 = vadd.xlane.f32.xlu0 %v768
        %v770 = vpop.xlane.xlu0 %769
        %v771 = vsel %vm704, %v750, 0.0
        %772 = vadd.xlane.f32.xlu0 %v771
        %v773 = vpop.xlane.xlu0 %772
        %v774 = vsel %vm704, %v752, 0.0
        %775 = vadd.xlane.f32.xlu0 %v774
        %v776 = vpop.xlane.xlu0 %775
        %v777 = vrcp.pop %v755
        %v778 = vrcp.pop %v758
        %v779 = vrcp.pop %v761
        %v780 = vrcp.pop %v764
        %v781 = vrcp.pop %v767
        %v782 = vrcp.pop %v770
        %v783 = vrcp.pop %v773
        %v784 = vrcp.pop %v776
        %v785 = vmul.f32 %v738, %v777
        %v786 = vmul.f32 %v740, %v778
        %v787 = vmul.f32 %v742, %v779
        %v788 = vmul.f32 %v744, %v780
        %v789 = vmul.f32 %v746, %v781
        %v790 = vmul.f32 %v748, %v782
        %v791 = vmul.f32 %v750, %v783
        %v792 = vmul.f32 %v752, %v784
        %v793 = vpack.c.bf16 %v786, %v785
        %v794 = vpack.c.bf16 %v788, %v787
        %v795 = vpack.c.bf16 %v790, %v789
        %v796 = vpack.c.bf16 %v792, %v791
        %v798 = vsel %vm704, %v793, 0
        %800 = vmatprep.subr.bf16.mxu0 0
        %801 = vmatpush1.bf16.msra.mxu0 0
        %802 = vmatprep.subr.bf16.mxu0 0
        %803 = vmatpush1.bf16.msra.mxu0 0
        %804 = vmatprep.subr.bf16.mxu0 0
        %805 = vmatpush1.bf16.msra.mxu0 0
        %806 = vmatprep.subr.bf16.mxu0 0
        %807 = vmatpush1.bf16.msra.mxu0 0
        %808 = vmatprep.subr.bf16.mxu0 0
        %809 = vmatpush1.bf16.msra.mxu0 0
        %810 = vmatprep.subr.bf16.mxu0 0
        %811 = vmatpush1.bf16.msra.mxu0 0
        %812 = vmatprep.subr.bf16.mxu0 0
        %813 = vmatpush1.bf16.msra.mxu0 0
        %814 = vmatprep.subr.bf16.mxu0 0
        %815 = vmatpush1.bf16.msra.mxu0 %v438
        %816 = vmatprep.subr.bf16.mxu0 0
        %817 = vmatpush2.bf16.msra.mxu0 0
        %818 = vmatprep.subr.bf16.mxu0 0
        %819 = vmatpush2.bf16.msra.mxu0 0
        %820 = vmatprep.subr.bf16.mxu0 0
        %821 = vmatpush2.bf16.msra.mxu0 0
        %822 = vmatprep.subr.bf16.mxu0 0
        %823 = vmatpush2.bf16.msra.mxu0 0
        %824 = vmatprep.subr.bf16.mxu0 0
        %825 = vmatpush2.bf16.msra.mxu0 0
        %826 = vmatprep.subr.bf16.mxu0 0
        %827 = vmatpush2.bf16.msra.mxu0 0
        %828 = vmatprep.subr.bf16.mxu0 0
        %829 = vmatpush2.bf16.msra.mxu0 0
        %830 = vmatprep.subr.bf16.mxu0 0
        %831 = vmatpush2.bf16.msra.mxu0 0
        %832 = vmatprep.mubr.bf16.mxu0 0
        %833 = vmatmul.mubr.bf16.gmra.mxu0 %v798
        %v834 = vpop.f32.mrf.mxu0
        %v835 = vadd.f32 0.0, %v834
        %v836 = vpop.f32.mrf.mxu0
        %v837 = vpop.f32.mrf.mxu0
        %v838 = vadd.f32 0.0, %v837
        %v839 = vpop.f32.mrf.mxu0
        %840 = vdwg.mxu0
        %vm841 = vcmp.gt.f32.partialorder %v835, 0.0
        %vm842 = vcmp.gt.f32.partialorder %v838, 0.0
        %v843 = vmin.f32 %v835, 0.0
        %v844 = vmin.f32 %v838, 0.0
        %v845 = vmul.f32 %v843, 1.442695
        %v846 = vpow.pop %v845
        %v847 = vmul.f32 %v844, 1.442695
        %v848 = vpow.pop %v847
        %v849 = vsub.f32 %v846, 1.0
        %v850 = vsub.f32 %v848, 1.0
        %v851 = vsel %vm841, %v835, %v849
        %v852 = vsel %vm842, %v838, %v850
        %853 = vst.msk [vmem:[#allocation2] sm:$0xff] %vm502, %v851
        %854 = vst.msk [vmem:[#allocation2 + $0x8] sm:$0xff] %vm502, %v852
        %856 = vrot.lane.b32.xlu0 %v438, 120
        %v857 = vpop.permute.xlu0 %856
        %v860 = vsel %vm704, %v794, 0
        %862 = vmatprep.subr.bf16.mxu0 0
        %863 = vmatpush1.bf16.msra.mxu0 0
        %864 = vmatprep.subr.bf16.mxu0 0
        %865 = vmatpush1.bf16.msra.mxu0 0
        %866 = vmatprep.subr.bf16.mxu0 0
        %867 = vmatpush1.bf16.msra.mxu0 0
        %868 = vmatprep.subr.bf16.mxu0 0
        %869 = vmatpush1.bf16.msra.mxu0 0
        %870 = vmatprep.subr.bf16.mxu0 0
        %871 = vmatpush1.bf16.msra.mxu0 0
        %872 = vmatprep.subr.bf16.mxu0 0
        %873 = vmatpush1.bf16.msra.mxu0 0
        %874 = vmatprep.subr.bf16.mxu0 0
        %875 = vmatpush1.bf16.msra.mxu0 0
        %876 = vmatprep.subr.bf16.mxu0 0
        %877 = vmatpush1.bf16.msra.mxu0 %v857
        %878 = vmatprep.subr.bf16.mxu0 0
        %879 = vmatpush2.bf16.msra.mxu0 0
        %880 = vmatprep.subr.bf16.mxu0 0
        %881 = vmatpush2.bf16.msra.mxu0 0
        %882 = vmatprep.subr.bf16.mxu0 0
        %883 = vmatpush2.bf16.msra.mxu0 0
        %884 = vmatprep.subr.bf16.mxu0 0
        %885 = vmatpush2.bf16.msra.mxu0 0
        %886 = vmatprep.subr.bf16.mxu0 0
        %887 = vmatpush2.bf16.msra.mxu0 0
        %888 = vmatprep.subr.bf16.mxu0 0
        %889 = vmatpush2.bf16.msra.mxu0 0
        %890 = vmatprep.subr.bf16.mxu0 0
        %891 = vmatpush2.bf16.msra.mxu0 0
        %892 = vmatprep.subr.bf16.mxu0 0
        %893 = vmatpush2.bf16.msra.mxu0 0
        %894 = vmatprep.mubr.bf16.mxu0 0
        %895 = vmatmul.mubr.bf16.gmra.mxu0 %v860
        %v896 = vpop.f32.mrf.mxu0
        %v897 = vadd.f32 0.0, %v896
        %v898 = vpop.f32.mrf.mxu0
        %v899 = vpop.f32.mrf.mxu0
        %v900 = vadd.f32 0.0, %v899
        %v901 = vpop.f32.mrf.mxu0
        %902 = vdwg.mxu0
        %vm903 = vcmp.gt.f32.partialorder %v897, 0.0
        %vm904 = vcmp.gt.f32.partialorder %v900, 0.0
        %v905 = vmin.f32 %v897, 0.0
        %v906 = vmin.f32 %v900, 0.0
        %v907 = vmul.f32 %v905, 1.442695
        %v908 = vpow.pop %v907
        %v909 = vmul.f32 %v906, 1.442695
        %v910 = vpow.pop %v909
        %v911 = vsub.f32 %v908, 1.0
        %v912 = vsub.f32 %v910, 1.0
        %v913 = vsel %vm903, %v897, %v911
        %v914 = vsel %vm904, %v900, %v912
        %917 = vrot.lane.b32.xlu0 %v913, 8
        %v918 = vpop.permute.xlu0 %917
        %919 = vrot.lane.b32.xlu0 %v914, 8
        %v920 = vpop.permute.xlu0 %919
        %vm923 = vcmask 130112
        %924 = vst.msk [vmem:[#allocation2] sm:$0xff] %vm923, %v918
        %925 = vst.msk [vmem:[#allocation2 + $0x8] sm:$0xff] %vm923, %v920
        %926 = vrot.lane.b32.xlu0 %v438, 112
        %v927 = vpop.permute.xlu0 %926
        %v930 = vsel %vm704, %v795, 0
        %932 = vmatprep.subr.bf16.mxu0 0
        %933 = vmatpush1.bf16.msra.mxu0 0
        %934 = vmatprep.subr.bf16.mxu0 0
        %935 = vmatpush1.bf16.msra.mxu0 0
        %936 = vmatprep.subr.bf16.mxu0 0
        %937 = vmatpush1.bf16.msra.mxu0 0
        %938 = vmatprep.subr.bf16.mxu0 0
        %939 = vmatpush1.bf16.msra.mxu0 0
        %940 = vmatprep.subr.bf16.mxu0 0
        %941 = vmatpush1.bf16.msra.mxu0 0
        %942 = vmatprep.subr.bf16.mxu0 0
        %943 = vmatpush1.bf16.msra.mxu0 0
        %944 = vmatprep.subr.bf16.mxu0 0
        %945 = vmatpush1.bf16.msra.mxu0 0
        %946 = vmatprep.subr.bf16.mxu0 0
        %947 = vmatpush1.bf16.msra.mxu0 %v927
        %948 = vmatprep.subr.bf16.mxu0 0
        %949 = vmatpush2.bf16.msra.mxu0 0
        %950 = vmatprep.subr.bf16.mxu0 0
        %951 = vmatpush2.bf16.msra.mxu0 0
        %952 = vmatprep.subr.bf16.mxu0 0
        %953 = vmatpush2.bf16.msra.mxu0 0
        %954 = vmatprep.subr.bf16.mxu0 0
        %955 = vmatpush2.bf16.msra.mxu0 0
        %956 = vmatprep.subr.bf16.mxu0 0
        %957 = vmatpush2.bf16.msra.mxu0 0
        %958 = vmatprep.subr.bf16.mxu0 0
        %959 = vmatpush2.bf16.msra.mxu0 0
        %960 = vmatprep.subr.bf16.mxu0 0
        %961 = vmatpush2.bf16.msra.mxu0 0
        %962 = vmatprep.subr.bf16.mxu0 0
        %963 = vmatpush2.bf16.msra.mxu0 0
        %964 = vmatprep.mubr.bf16.mxu0 0
        %965 = vmatmul.mubr.bf16.gmra.mxu0 %v930
        %v966 = vpop.f32.mrf.mxu0
        %v967 = vadd.f32 0.0, %v966
        %v968 = vpop.f32.mrf.mxu0
        %v969 = vpop.f32.mrf.mxu0
        %v970 = vadd.f32 0.0, %v969
        %v971 = vpop.f32.mrf.mxu0
        %972 = vdwg.mxu0
        %vm973 = vcmp.gt.f32.partialorder %v967, 0.0
        %vm974 = vcmp.gt.f32.partialorder %v970, 0.0
        %v975 = vmin.f32 %v967, 0.0
        %v976 = vmin.f32 %v970, 0.0
        %v977 = vmul.f32 %v975, 1.442695
        %v978 = vpow.pop %v977
        %v979 = vmul.f32 %v976, 1.442695
        %v980 = vpow.pop %v979
        %v981 = vsub.f32 %v978, 1.0
        %v982 = vsub.f32 %v980, 1.0
        %v983 = vsel %vm973, %v967, %v981
        %v984 = vsel %vm974, %v970, %v982
        %987 = vrot.lane.b32.xlu0 %v983, 16
        %v988 = vpop.permute.xlu0 %987
        %989 = vrot.lane.b32.xlu0 %v984, 16
        %v990 = vpop.permute.xlu0 %989
        %vm993 = vcmask 195712
        %994 = vst.msk [vmem:[#allocation2] sm:$0xff] %vm993, %v988
        %995 = vst.msk [vmem:[#allocation2 + $0x8] sm:$0xff] %vm993, %v990
        %996 = vrot.lane.b32.xlu0 %v438, 104
        %v997 = vpop.permute.xlu0 %996
        %v1000 = vsel %vm704, %v796, 0
        %1002 = vmatprep.subr.bf16.mxu0 0
        %1003 = vmatpush1.bf16.msra.mxu0 0
        %1004 = vmatprep.subr.bf16.mxu0 0
        %1005 = vmatpush1.bf16.msra.mxu0 0
        %1006 = vmatprep.subr.bf16.mxu0 0
        %1007 = vmatpush1.bf16.msra.mxu0 0
        %1008 = vmatprep.subr.bf16.mxu0 0
        %1009 = vmatpush1.bf16.msra.mxu0 0
        %1010 = vmatprep.subr.bf16.mxu0 0
        %1011 = vmatpush1.bf16.msra.mxu0 0
        %1012 = vmatprep.subr.bf16.mxu0 0
        %1013 = vmatpush1.bf16.msra.mxu0 0
        %1014 = vmatprep.subr.bf16.mxu0 0
        %1015 = vmatpush1.bf16.msra.mxu0 0
        %1016 = vmatprep.subr.bf16.mxu0 0
        %1017 = vmatpush1.bf16.msra.mxu0 %v997
        %1018 = vmatprep.subr.bf16.mxu0 0
        %1019 = vmatpush2.bf16.msra.mxu0 0
        %1020 = vmatprep.subr.bf16.mxu0 0
        %1021 = vmatpush2.bf16.msra.mxu0 0
        %1022 = vmatprep.subr.bf16.mxu0 0
        %1023 = vmatpush2.bf16.msra.mxu0 0
        %1024 = vmatprep.subr.bf16.mxu0 0
        %1025 = vmatpush2.bf16.msra.mxu0 0
        %1026 = vmatprep.subr.bf16.mxu0 0
        %1027 = vmatpush2.bf16.msra.mxu0 0
        %1028 = vmatprep.subr.bf16.mxu0 0
        %1029 = vmatpush2.bf16.msra.mxu0 0
        %1030 = vmatprep.subr.bf16.mxu0 0
        %1031 = vmatpush2.bf16.msra.mxu0 0
        %1032 = vmatprep.subr.bf16.mxu0 0
        %1033 = vmatpush2.bf16.msra.mxu0 0
        %1034 = vmatprep.mubr.bf16.mxu0 0
        %1035 = vmatmul.mubr.bf16.gmra.mxu0 %v1000
        %v1036 = vpop.f32.mrf.mxu0
        %v1037 = vadd.f32 0.0, %v1036
        %v1038 = vpop.f32.mrf.mxu0
        %v1039 = vpop.f32.mrf.mxu0
        %v1040 = vadd.f32 0.0, %v1039
        %v1041 = vpop.f32.mrf.mxu0
        %1042 = vdwg.mxu0
        %vm1043 = vcmp.gt.f32.partialorder %v1037, 0.0
        %vm1044 = vcmp.gt.f32.partialorder %v1040, 0.0
        %v1045 = vmin.f32 %v1037, 0.0
        %v1046 = vmin.f32 %v1040, 0.0
        %v1047 = vmul.f32 %v1045, 1.442695
        %v1048 = vpow.pop %v1047
        %v1049 = vmul.f32 %v1046, 1.442695
        %v1050 = vpow.pop %v1049
        %v1051 = vsub.f32 %v1048, 1.0
        %v1052 = vsub.f32 %v1050, 1.0
        %v1053 = vsel %vm1043, %v1037, %v1051
        %v1054 = vsel %vm1044, %v1040, %v1052
        %1057 = vrot.lane.b32.xlu0 %v1053, 24
        %v1058 = vpop.permute.xlu0 %1057
        %1059 = vrot.lane.b32.xlu0 %v1054, 24
        %v1060 = vpop.permute.xlu0 %1059
        %vm1063 = vcmask 261312
        %1064 = vst.msk [vmem:[#allocation2] sm:$0xff] %vm1063, %v1058
        %1065 = vst.msk [vmem:[#allocation2 + $0x8] sm:$0xff] %vm1063, %v1060
        %v1066 = vld [vmem:[#allocation2] sm:$0xff]
        %v1067 = vld [vmem:[#allocation2 + $0x8] sm:$0xff]
        %v1068 = vld [vmem:[%s4] sm:$0xf]
        %v1069 = vld [vmem:[%s4 + $0x4] sm:$0xf]
        %v1070 = vld [vmem:[%s4 + $0x8] sm:$0xf]
        %v1071 = vld [vmem:[%s4 + $0xc] sm:$0xf]
        %v1072 = vld [vmem:[%s5] sm:$0xf]
        %v1073 = vld [vmem:[%s5 + $0x4] sm:$0xf]
        %v1074 = vld [vmem:[%s5 + $0x8] sm:$0xf]
        %v1075 = vld [vmem:[%s5 + $0xc] sm:$0xf]
        %v1076 = vpack.c.bf16 %v1067, %v1066
        %v1081 = vunpack.c.l.b16 %v1068
        %v1082 = vunpack.c.l.b16 %v1069
        %v1083 = vunpack.c.l.b16 %v1070
        %v1084 = vunpack.c.l.b16 %v1071
        %v1085 = vpack.c.b16 %v1082, %v1081
        %v1086 = vpack.c.b16 %v1084, %v1083
        %v1090 = vsel %vm393, %v1076, 0
        %1092 = vmatprep.subr.bf16.mxu0 0
        %1093 = vmatpush1.bf16.msra.mxu0 0
        %1094 = vmatprep.subr.bf16.mxu0 0
        %1095 = vmatpush1.bf16.msra.mxu0 0
        %1096 = vmatprep.subr.bf16.mxu0 0
        %1097 = vmatpush1.bf16.msra.mxu0 0
        %1098 = vmatprep.subr.bf16.mxu0 0
        %1099 = vmatpush1.bf16.msra.mxu0 0
        %1100 = vmatprep.subr.bf16.mxu0 0
        %1101 = vmatpush1.bf16.msra.mxu0 0
        %1102 = vmatprep.subr.bf16.mxu0 0
        %1103 = vmatpush1.bf16.msra.mxu0 0
        %1104 = vmatprep.subr.bf16.mxu0 0
        %1105 = vmatpush1.bf16.msra.mxu0 %v1086
        %1106 = vmatprep.subr.bf16.mxu0 0
        %1107 = vmatpush1.bf16.msra.mxu0 %v1085
        %1108 = vmatprep.subr.bf16.mxu0 0
        %1109 = vmatpush2.bf16.msra.mxu0 0
        %1110 = vmatprep.subr.bf16.mxu0 0
        %1111 = vmatpush2.bf16.msra.mxu0 0
        %1112 = vmatprep.subr.bf16.mxu0 0
        %1113 = vmatpush2.bf16.msra.mxu0 0
        %1114 = vmatprep.subr.bf16.mxu0 0
        %1115 = vmatpush2.bf16.msra.mxu0 0
        %1116 = vmatprep.subr.bf16.mxu0 0
        %1117 = vmatpush2.bf16.msra.mxu0 0
        %1118 = vmatprep.subr.bf16.mxu0 0
        %1119 = vmatpush2.bf16.msra.mxu0 0
        %1120 = vmatprep.subr.bf16.mxu0 0
        %1121 = vmatpush2.bf16.msra.mxu0 0
        %1122 = vmatprep.subr.bf16.mxu0 0
        %1123 = vmatpush2.bf16.msra.mxu0 0
        %1124 = vmatprep.mubr.bf16.mxu0 0
        %1125 = vmatmul.mubr.bf16.gmra.mxu0 %v1090
        %v1126 = vpop.f32.mrf.mxu0
        %v1127 = vadd.f32 0.0, %v1126
        %v1128 = vpop.f32.mrf.mxu0
        %v1129 = vpop.f32.mrf.mxu0
        %v1130 = vadd.f32 0.0, %v1129
        %v1131 = vpop.f32.mrf.mxu0
        %1132 = vdwg.mxu0
        %v1133 = vpack.c.bf16 %v1130, %v1127
        %v1138 = vunpack.c.l.b16 %v1072
        %v1139 = vunpack.c.l.b16 %v1073
        %v1140 = vunpack.c.l.b16 %v1074
        %v1141 = vunpack.c.l.b16 %v1075
        %v1142 = vpack.c.b16 %v1139, %v1138
        %v1143 = vpack.c.b16 %v1141, %v1140
        %v1147 = vsel %vm393, %v1133, 0
        %1149 = vmatprep.subr.bf16.mxu0 0
        %1150 = vmatpush1.bf16.msra.mxu0 0
        %1151 = vmatprep.subr.bf16.mxu0 0
        %1152 = vmatpush1.bf16.msra.mxu0 0
        %1153 = vmatprep.subr.bf16.mxu0 0
        %1154 = vmatpush1.bf16.msra.mxu0 0
        %1155 = vmatprep.subr.bf16.mxu0 0
        %1156 = vmatpush1.bf16.msra.mxu0 0
        %1157 = vmatprep.subr.bf16.mxu0 0
        %1158 = vmatpush1.bf16.msra.mxu0 0
        %1159 = vmatprep.subr.bf16.mxu0 0
        %1160 = vmatpush1.bf16.msra.mxu0 0
        %1161 = vmatprep.subr.bf16.mxu0 0
        %1162 = vmatpush1.bf16.msra.mxu0 %v1143
        %1163 = vmatprep.subr.bf16.mxu0 0
        %1164 = vmatpush1.bf16.msra.mxu0 %v1142
        %1165 = vmatprep.subr.bf16.mxu0 0
        %1166 = vmatpush2.bf16.msra.mxu0 0
        %1167 = vmatprep.subr.bf16.mxu0 0
        %1168 = vmatpush2.bf16.msra.mxu0 0
        %1169 = vmatprep.subr.bf16.mxu0 0
        %1170 = vmatpush2.bf16.msra.mxu0 0
        %1171 = vmatprep.subr.bf16.mxu0 0
        %1172 = vmatpush2.bf16.msra.mxu0 0
        %1173 = vmatprep.subr.bf16.mxu0 0
        %1174 = vmatpush2.bf16.msra.mxu0 0
        %1175 = vmatprep.subr.bf16.mxu0 0
        %1176 = vmatpush2.bf16.msra.mxu0 0
        %1177 = vmatprep.subr.bf16.mxu0 0
        %1178 = vmatpush2.bf16.msra.mxu0 0
        %1179 = vmatprep.subr.bf16.mxu0 0
        %1180 = vmatpush2.bf16.msra.mxu0 0
        %1181 = vmatprep.mubr.bf16.mxu0 0
        %1182 = vmatmul.mubr.bf16.gmra.mxu0 %v1147
        %v1183 = vpop.f32.mrf.mxu0
        %v1184 = vadd.f32 0.0, %v1183
        %v1185 = vpop.f32.mrf.mxu0
        %v1186 = vpop.f32.mrf.mxu0
        %v1187 = vadd.f32 0.0, %v1186
        %v1188 = vpop.f32.mrf.mxu0
        %1189 = vdwg.mxu0
        %v1191 = vsel %vm502, %v1184, 0
        %v1194 = vsel %vm502, %v1187, 0
        %1196 = vmatprep.subr.mxu0 0.0
        %1197 = vmatpush1.xpose.msra.mxu0 0.0
        %1198 = vmatprep.subr.mxu0 0.0
        %1199 = vmatpush1.xpose.msra.mxu0 0.0
        %1200 = vmatprep.subr.mxu0 0.0
        %1201 = vmatpush1.xpose.msra.mxu0 0.0
        %1202 = vmatprep.subr.mxu0 0.0
        %1203 = vmatpush1.xpose.msra.mxu0 0.0
        %1204 = vmatprep.subr.mxu0 0.0
        %1205 = vmatpush1.xpose.msra.mxu0 0.0
        %1206 = vmatprep.subr.mxu0 0.0
        %1207 = vmatpush1.xpose.msra.mxu0 0.0
        %1208 = vmatprep.subr.mxu0 0.0
        %1209 = vmatpush1.xpose.msra.mxu0 0.0
        %1210 = vmatprep.subr.mxu0 0.0
        %1211 = vmatpush1.xpose.msra.mxu0 0.0
        %1212 = vmatprep.subr.mxu0 0.0
        %1213 = vmatpush1.xpose.msra.mxu0 0.0
        %1214 = vmatprep.subr.mxu0 0.0
        %1215 = vmatpush1.xpose.msra.mxu0 0.0
        %1216 = vmatprep.subr.mxu0 0.0
        %1217 = vmatpush1.xpose.msra.mxu0 0.0
        %1218 = vmatprep.subr.mxu0 0.0
        %1219 = vmatpush1.xpose.msra.mxu0 0.0
        %1220 = vmatprep.subr.mxu0 0.0
        %1221 = vmatpush1.xpose.msra.mxu0 0.0
        %1222 = vmatprep.subr.mxu0 0.0
        %1223 = vmatpush1.xpose.msra.mxu0 0.0
        %1224 = vmatprep.subr.mxu0 0.0
        %1225 = vmatpush1.xpose.msra.mxu0 %v1194
        %1226 = vmatprep.subr.mxu0 0.0
        %1227 = vmatpush1.xpose.msra.mxu0 %v1191
        %1228 = vmatprep.subr.mxu0 0.0
        %1229 = vmatpush2.xpose.msra.mxu0 0.0
        %1230 = vmatprep.subr.mxu0 0.0
        %1231 = vmatpush2.xpose.msra.mxu0 0.0
        %1232 = vmatprep.subr.mxu0 0.0
        %1233 = vmatpush2.xpose.msra.mxu0 0.0
        %1234 = vmatprep.subr.mxu0 0.0
        %1235 = vmatpush2.xpose.msra.mxu0 0.0
        %1236 = vmatprep.subr.mxu0 0.0
        %1237 = vmatpush2.xpose.msra.mxu0 0.0
        %1238 = vmatprep.subr.mxu0 0.0
        %1239 = vmatpush2.xpose.msra.mxu0 0.0
        %1240 = vmatprep.subr.mxu0 0.0
        %1241 = vmatpush2.xpose.msra.mxu0 0.0
        %1242 = vmatprep.subr.mxu0 0.0
        %1243 = vmatpush2.xpose.msra.mxu0 0.0
        %1244 = vmatprep.subr.mxu0 0.0
        %1245 = vmatpush2.xpose.msra.mxu0 0.0
        %1246 = vmatprep.subr.mxu0 0.0
        %1247 = vmatpush2.xpose.msra.mxu0 0.0
        %1248 = vmatprep.subr.mxu0 0.0
        %1249 = vmatpush2.xpose.msra.mxu0 0.0
        %1250 = vmatprep.subr.mxu0 0.0
        %1251 = vmatpush2.xpose.msra.mxu0 0.0
        %1252 = vmatprep.subr.mxu0 0.0
        %1253 = vmatpush2.xpose.msra.mxu0 0.0
        %1254 = vmatprep.subr.mxu0 0.0
        %1255 = vmatpush2.xpose.msra.mxu0 0.0
        %1256 = vmatprep.subr.mxu0 0.0
        %1257 = vmatpush2.xpose.msra.mxu0 0.0
        %1258 = vmatprep.subr.mxu0 0.0
        %1259 = vmatpush2.xpose.msra.mxu0 0.0
        %1260 = vmatprep.mubr.f32.mxu0 0.0
        %1261 = vmatmul.mubr.f32.gmra.mxu0 %v504
        %v1262 = vpop.f32.mrf.mxu0
        %v1263 = vadd.f32 0.0, %v1262
        %v1264 = vpop.f32.mrf.mxu0
        %1265 = vdwg.mxu0
        %v1266 = vlaneseq
        %v1267 = vshrl.u32 %v1266, 7
        %v1268 = vsub.s32 0, %v1267
        %v1269 = vrot.slane %v1263, %v1268
        %1271 = vbcast.lane.b32.xlu0 %v1269, 256
        %v1272 = vpop.permute.xlu0 %1271
        %s1274 = sor.u32 256, 8
        %1275 = vbcast.lane.b32.xlu0 %v1269, %s1274
        %v1276 = vpop.permute.xlu0 %1275
        %v1277 = vlaneseq
        %v1278 = vshrl.u32 %v1277, 7
        %v1279 = vsub.s32 1, %v1278
        %v1280 = vrot.slane %v1263, %v1279
        %1282 = vbcast.lane.b32.xlu0 %v1280, 256
        %v1283 = vpop.permute.xlu0 %1282
        %s1285 = sor.u32 256, 8
        %1286 = vbcast.lane.b32.xlu0 %v1280, %s1285
        %v1287 = vpop.permute.xlu0 %1286
        %v1288 = vlaneseq
        %v1289 = vshrl.u32 %v1288, 7
        %v1290 = vsub.s32 2, %v1289
        %v1291 = vrot.slane %v1263, %v1290
        %1293 = vbcast.lane.b32.xlu0 %v1291, 256
        %v1294 = vpop.permute.xlu0 %1293
        %s1296 = sor.u32 256, 8
        %1297 = vbcast.lane.b32.xlu0 %v1291, %s1296
        %v1298 = vpop.permute.xlu0 %1297
        %v1299 = vlaneseq
        %v1300 = vshrl.u32 %v1299, 7
        %v1301 = vsub.s32 3, %v1300
        %v1302 = vrot.slane %v1263, %v1301
        %1304 = vbcast.lane.b32.xlu0 %v1302, 256
        %v1305 = vpop.permute.xlu0 %1304
        %s1307 = sor.u32 256, 8
        %1308 = vbcast.lane.b32.xlu0 %v1302, %s1307
        %v1309 = vpop.permute.xlu0 %1308
        %v1311 = vcombine.high %v1263, %v1263
        %v1313 = vunpack.c.l.s4 1966171168
        %v1314 = vunpack.c.0.s8 %v1313
        %v1315 = vlaneseq
        %v1316 = vshrl.u32 %v1315, 7
        %v1317 = vsub.s32 %v1314, %v1316
        %v1318 = vrot.slane %v1311, %v1317
        %v1319 = vcombine.high %v1318, %v1318
        %v1321 = vunpack.c.l.s4 1966171168
        %v1322 = vunpack.c.0.s8 %v1321
        %v1323 = vlaneseq
        %v1324 = vshrl.u32 %v1323, 7
        %v1325 = vsub.s32 %v1322, %v1324
        %v1326 = vrot.slane %v1318, %v1325
        %v1328 = vunpack.c.l.s4 1966171168
        %v1329 = vunpack.c.0.s8 %v1328
        %v1330 = vlaneseq
        %v1331 = vshrl.u32 %v1330, 7
        %v1332 = vsub.s32 %v1329, %v1331
        %v1333 = vrot.slane %v1319, %v1332
        %v1334 = vcombine.high %v1326, %v1326
        %v1335 = vcombine.high %v1333, %v1333
        %v1336 = vlaneseq
        %v1337 = vshrl.u32 %v1336, 7
        %v1338 = vsub.s32 0, %v1337
        %v1339 = vrot.slane %v1326, %v1338
        %v1340 = vlaneseq
        %v1341 = vshrl.u32 %v1340, 7
        %v1342 = vsub.s32 0, %v1341
        %v1343 = vrot.slane %v1333, %v1342
        %v1344 = vlaneseq
        %v1345 = vshrl.u32 %v1344, 7
        %v1346 = vsub.s32 0, %v1345
        %v1347 = vrot.slane %v1334, %v1346
        %v1348 = vlaneseq
        %v1349 = vshrl.u32 %v1348, 7
        %v1350 = vsub.s32 0, %v1349
        %v1351 = vrot.slane %v1335, %v1350
        %v1356 = vadd.f32 %v1272, %v1339
        %v1357 = vadd.f32 %v1276, %v1339
        %v1358 = vadd.f32 %v1283, %v1343
        %v1359 = vadd.f32 %v1287, %v1343
        %v1360 = vadd.f32 %v1294, %v1347
        %v1361 = vadd.f32 %v1298, %v1347
        %v1362 = vadd.f32 %v1305, %v1351
        %v1363 = vadd.f32 %v1309, %v1351
        %v1364 = vmul.f32 %v1356, 0.2
        %v1365 = vmul.f32 %v1357, 0.2
        %v1366 = vmul.f32 %v1358, 0.2
        %v1367 = vmul.f32 %v1359, 0.2
        %v1368 = vmul.f32 %v1360, 0.2
        %v1369 = vmul.f32 %v1361, 0.2
        %v1370 = vmul.f32 %v1362, 0.2
        %v1371 = vmul.f32 %v1363, 0.2
        %v1372 = vmax.f32 %v1356, %v1364
        %v1373 = vmax.f32 %v1357, %v1365
        %v1374 = vmax.f32 %v1358, %v1366
        %v1375 = vmax.f32 %v1359, %v1367
        %v1376 = vmax.f32 %v1360, %v1368
        %v1377 = vmax.f32 %v1361, %v1369
        %v1378 = vmax.f32 %v1362, %v1370
        %v1379 = vmax.f32 %v1363, %v1371
        %v1380 = vadd.f32 %v1372, %v370
        %v1381 = vadd.f32 %v1373, %v371
        %v1382 = vadd.f32 %v1374, %v370
        %v1383 = vadd.f32 %v1375, %v371
        %v1384 = vadd.f32 %v1376, %v370
        %v1385 = vadd.f32 %v1377, %v371
        %v1386 = vadd.f32 %v1378, %v370
        %v1387 = vadd.f32 %v1379, %v371
        %v1388 = vsel %vm704, %v1380, -inf
        %1389 = vmax.xlane.f32.xlu0 %v1388
        %v1390 = vpop.xlane.xlu0 %1389
        %v1391 = vsel %vm704, %v1381, -inf
        %1392 = vmax.xlane.f32.xlu0 %v1391
        %v1393 = vpop.xlane.xlu0 %1392
        %v1394 = vsel %vm704, %v1382, -inf
        %1395 = vmax.xlane.f32.xlu0 %v1394
        %v1396 = vpop.xlane.xlu0 %1395
        %v1397 = vsel %vm704, %v1383, -inf
        %1398 = vmax.xlane.f32.xlu0 %v1397
        %v1399 = vpop.xlane.xlu0 %1398
        %v1400 = vsel %vm704, %v1384, -inf
        %1401 = vmax.xlane.f32.xlu0 %v1400
        %v1402 = vpop.xlane.xlu0 %1401
        %v1403 = vsel %vm704, %v1385, -inf
        %1404 = vmax.xlane.f32.xlu0 %v1403
        %v1405 = vpop.xlane.xlu0 %1404
        %v1406 = vsel %vm704, %v1386, -inf
        %1407 = vmax.xlane.f32.xlu0 %v1406
        %v1408 = vpop.xlane.xlu0 %1407
        %v1409 = vsel %vm704, %v1387, -inf
        %1410 = vmax.xlane.f32.xlu0 %v1409
        %v1411 = vpop.xlane.xlu0 %1410
        %v1412 = vsub.f32 %v1380, %v1390
        %v1413 = vsub.f32 %v1381, %v1393
        %v1414 = vsub.f32 %v1382, %v1396
        %v1415 = vsub.f32 %v1383, %v1399
        %v1416 = vsub.f32 %v1384, %v1402
        %v1417 = vsub.f32 %v1385, %v1405
        %v1418 = vsub.f32 %v1386, %v1408
        %v1419 = vsub.f32 %v1387, %v1411
        %v1420 = vmul.f32 %v1412, 1.442695
        %v1421 = vpow.pop %v1420
        %v1422 = vmul.f32 %v1413, 1.442695
        %v1423 = vpow.pop %v1422
        %v1424 = vmul.f32 %v1414, 1.442695
        %v1425 = vpow.pop %v1424
        %v1426 = vmul.f32 %v1415, 1.442695
        %v1427 = vpow.pop %v1426
        %v1428 = vmul.f32 %v1416, 1.442695
        %v1429 = vpow.pop %v1428
        %v1430 = vmul.f32 %v1417, 1.442695
        %v1431 = vpow.pop %v1430
        %v1432 = vmul.f32 %v1418, 1.442695
        %v1433 = vpow.pop %v1432
        %v1434 = vmul.f32 %v1419, 1.442695
        %v1435 = vpow.pop %v1434
        %v1436 = vsel %vm704, %v1421, 0.0
        %1437 = vadd.xlane.f32.xlu0 %v1436
        %v1438 = vpop.xlane.xlu0 %1437
        %v1439 = vsel %vm704, %v1423, 0.0
        %1440 = vadd.xlane.f32.xlu0 %v1439
        %v1441 = vpop.xlane.xlu0 %1440
        %v1442 = vsel %vm704, %v1425, 0.0
        %1443 = vadd.xlane.f32.xlu0 %v1442
        %v1444 = vpop.xlane.xlu0 %1443
        %v1445 = vsel %vm704, %v1427, 0.0
        %1446 = vadd.xlane.f32.xlu0 %v1445
        %v1447 = vpop.xlane.xlu0 %1446
        %v1448 = vsel %vm704, %v1429, 0.0
        %1449 = vadd.xlane.f32.xlu0 %v1448
        %v1450 = vpop.xlane.xlu0 %1449
        %v1451 = vsel %vm704, %v1431, 0.0
        %1452 = vadd.xlane.f32.xlu0 %v1451
        %v1453 = vpop.xlane.xlu0 %1452
        %v1454 = vsel %vm704, %v1433, 0.0
        %1455 = vadd.xlane.f32.xlu0 %v1454
        %v1456 = vpop.xlane.xlu0 %1455
        %v1457 = vsel %vm704, %v1435, 0.0
        %1458 = vadd.xlane.f32.xlu0 %v1457
        %v1459 = vpop.xlane.xlu0 %1458
        %v1460 = vrcp.pop %v1438
        %v1461 = vrcp.pop %v1441
        %v1462 = vrcp.pop %v1444
        %v1463 = vrcp.pop %v1447
        %v1464 = vrcp.pop %v1450
        %v1465 = vrcp.pop %v1453
        %v1466 = vrcp.pop %v1456
        %v1467 = vrcp.pop %v1459
        %v1468 = vmul.f32 %v1421, %v1460
        %v1469 = vmul.f32 %v1423, %v1461
        %v1470 = vmul.f32 %v1425, %v1462
        %v1471 = vmul.f32 %v1427, %v1463
        %v1472 = vmul.f32 %v1429, %v1464
        %v1473 = vmul.f32 %v1431, %v1465
        %v1474 = vmul.f32 %v1433, %v1466
        %v1475 = vmul.f32 %v1435, %v1467
        %v1476 = vpack.c.bf16 %v1469, %v1468
        %v1477 = vpack.c.bf16 %v1471, %v1470
        %v1478 = vpack.c.bf16 %v1473, %v1472
        %v1479 = vpack.c.bf16 %v1475, %v1474
        %v1481 = vsel %vm704, %v1476, 0
        %1483 = vmatprep.subr.bf16.mxu0 0
        %1484 = vmatpush1.bf16.msra.mxu0 0
        %1485 = vmatprep.subr.bf16.mxu0 0
        %1486 = vmatpush1.bf16.msra.mxu0 0
        %1487 = vmatprep.subr.bf16.mxu0 0
        %1488 = vmatpush1.bf16.msra.mxu0 0
        %1489 = vmatprep.subr.bf16.mxu0 0
        %1490 = vmatpush1.bf16.msra.mxu0 0
        %1491 = vmatprep.subr.bf16.mxu0 0
        %1492 = vmatpush1.bf16.msra.mxu0 0
        %1493 = vmatprep.subr.bf16.mxu0 0
        %1494 = vmatpush1.bf16.msra.mxu0 0
        %1495 = vmatprep.subr.bf16.mxu0 0
        %1496 = vmatpush1.bf16.msra.mxu0 0
        %1497 = vmatprep.subr.bf16.mxu0 0
        %1498 = vmatpush1.bf16.msra.mxu0 %v1133
        %1499 = vmatprep.subr.bf16.mxu0 0
        %1500 = vmatpush2.bf16.msra.mxu0 0
        %1501 = vmatprep.subr.bf16.mxu0 0
        %1502 = vmatpush2.bf16.msra.mxu0 0
        %1503 = vmatprep.subr.bf16.mxu0 0
        %1504 = vmatpush2.bf16.msra.mxu0 0
        %1505 = vmatprep.subr.bf16.mxu0 0
        %1506 = vmatpush2.bf16.msra.mxu0 0
        %1507 = vmatprep.subr.bf16.mxu0 0
        %1508 = vmatpush2.bf16.msra.mxu0 0
        %1509 = vmatprep.subr.bf16.mxu0 0
        %1510 = vmatpush2.bf16.msra.mxu0 0
        %1511 = vmatprep.subr.bf16.mxu0 0
        %1512 = vmatpush2.bf16.msra.mxu0 0
        %1513 = vmatprep.subr.bf16.mxu0 0
        %1514 = vmatpush2.bf16.msra.mxu0 0
        %1515 = vmatprep.mubr.bf16.mxu0 0
        %1516 = vmatmul.mubr.bf16.gmra.mxu0 %v1481
        %v1517 = vpop.f32.mrf.mxu0
        %v1518 = vadd.f32 0.0, %v1517
        %v1519 = vpop.f32.mrf.mxu0
        %v1520 = vpop.f32.mrf.mxu0
        %v1521 = vadd.f32 0.0, %v1520
        %v1522 = vpop.f32.mrf.mxu0
        %1523 = vdwg.mxu0
        %vm1524 = vcmp.gt.f32.partialorder %v1518, 0.0
        %vm1525 = vcmp.gt.f32.partialorder %v1521, 0.0
        %v1526 = vmin.f32 %v1518, 0.0
        %v1527 = vmin.f32 %v1521, 0.0
        %v1528 = vmul.f32 %v1526, 1.442695
        %v1529 = vpow.pop %v1528
        %v1530 = vmul.f32 %v1527, 1.442695
        %v1531 = vpow.pop %v1530
        %v1532 = vsub.f32 %v1529, 1.0
        %v1533 = vsub.f32 %v1531, 1.0
        %v1534 = vsel %vm1524, %v1518, %v1532
        %v1535 = vsel %vm1525, %v1521, %v1533
        %v1536 = vadd.f32 %v1534, %v1066
        %v1537 = vadd.f32 %v1535, %v1067
        %1538 = vst.msk [vmem:[#allocation2] sm:$0xff] %vm502, %v1536
        %1539 = vst.msk [vmem:[#allocation2 + $0x8] sm:$0xff] %vm502, %v1537
        %1541 = vrot.lane.b32.xlu0 %v1133, 120
        %v1542 = vpop.permute.xlu0 %1541
        %v1545 = vsel %vm704, %v1477, 0
        %1547 = vmatprep.subr.bf16.mxu0 0
        %1548 = vmatpush1.bf16.msra.mxu0 0
        %1549 = vmatprep.subr.bf16.mxu0 0
        %1550 = vmatpush1.bf16.msra.mxu0 0
        %1551 = vmatprep.subr.bf16.mxu0 0
        %1552 = vmatpush1.bf16.msra.mxu0 0
        %1553 = vmatprep.subr.bf16.mxu0 0
        %1554 = vmatpush1.bf16.msra.mxu0 0
        %1555 = vmatprep.subr.bf16.mxu0 0
        %1556 = vmatpush1.bf16.msra.mxu0 0
        %1557 = vmatprep.subr.bf16.mxu0 0
        %1558 = vmatpush1.bf16.msra.mxu0 0
        %1559 = vmatprep.subr.bf16.mxu0 0
        %1560 = vmatpush1.bf16.msra.mxu0 0
        %1561 = vmatprep.subr.bf16.mxu0 0
        %1562 = vmatpush1.bf16.msra.mxu0 %v1542
        %1563 = vmatprep.subr.bf16.mxu0 0
        %1564 = vmatpush2.bf16.msra.mxu0 0
        %1565 = vmatprep.subr.bf16.mxu0 0
        %1566 = vmatpush2.bf16.msra.mxu0 0
        %1567 = vmatprep.subr.bf16.mxu0 0
        %1568 = vmatpush2.bf16.msra.mxu0 0
        %1569 = vmatprep.subr.bf16.mxu0 0
        %1570 = vmatpush2.bf16.msra.mxu0 0
        %1571 = vmatprep.subr.bf16.mxu0 0
        %1572 = vmatpush2.bf16.msra.mxu0 0
        %1573 = vmatprep.subr.bf16.mxu0 0
        %1574 = vmatpush2.bf16.msra.mxu0 0
        %1575 = vmatprep.subr.bf16.mxu0 0
        %1576 = vmatpush2.bf16.msra.mxu0 0
        %1577 = vmatprep.subr.bf16.mxu0 0
        %1578 = vmatpush2.bf16.msra.mxu0 0
        %1579 = vmatprep.mubr.bf16.mxu0 0
        %1580 = vmatmul.mubr.bf16.gmra.mxu0 %v1545
        %v1581 = vpop.f32.mrf.mxu0
        %v1582 = vadd.f32 0.0, %v1581
        %v1583 = vpop.f32.mrf.mxu0
        %v1584 = vpop.f32.mrf.mxu0
        %v1585 = vadd.f32 0.0, %v1584
        %v1586 = vpop.f32.mrf.mxu0
        %1587 = vdwg.mxu0
        %vm1588 = vcmp.gt.f32.partialorder %v1582, 0.0
        %vm1589 = vcmp.gt.f32.partialorder %v1585, 0.0
        %v1590 = vmin.f32 %v1582, 0.0
        %v1591 = vmin.f32 %v1585, 0.0
        %v1592 = vmul.f32 %v1590, 1.442695
        %v1593 = vpow.pop %v1592
        %v1594 = vmul.f32 %v1591, 1.442695
        %v1595 = vpow.pop %v1594
        %v1596 = vsub.f32 %v1593, 1.0
        %v1597 = vsub.f32 %v1595, 1.0
        %v1598 = vsel %vm1588, %v1582, %v1596
        %v1599 = vsel %vm1589, %v1585, %v1597
        %1602 = vrot.lane.b32.xlu0 %v1066, 120
        %v1603 = vpop.permute.xlu0 %1602
        %1604 = vrot.lane.b32.xlu0 %v1067, 120
        %v1605 = vpop.permute.xlu0 %1604
        %v1608 = vadd.f32 %v1598, %v1603
        %v1609 = vadd.f32 %v1599, %v1605
        %1612 = vrot.lane.b32.xlu0 %v1608, 8
        %v1613 = vpop.permute.xlu0 %1612
        %1614 = vrot.lane.b32.xlu0 %v1609, 8
        %v1615 = vpop.permute.xlu0 %1614
        %1618 = vst.msk [vmem:[#allocation2] sm:$0xff] %vm923, %v1613
        %1619 = vst.msk [vmem:[#allocation2 + $0x8] sm:$0xff] %vm923, %v1615
        %1620 = vrot.lane.b32.xlu0 %v1133, 112
        %v1621 = vpop.permute.xlu0 %1620
        %v1624 = vsel %vm704, %v1478, 0
        %1626 = vmatprep.subr.bf16.mxu0 0
        %1627 = vmatpush1.bf16.msra.mxu0 0
        %1628 = vmatprep.subr.bf16.mxu0 0
        %1629 = vmatpush1.bf16.msra.mxu0 0
        %1630 = vmatprep.subr.bf16.mxu0 0
        %1631 = vmatpush1.bf16.msra.mxu0 0
        %1632 = vmatprep.subr.bf16.mxu0 0
        %1633 = vmatpush1.bf16.msra.mxu0 0
        %1634 = vmatprep.subr.bf16.mxu0 0
        %1635 = vmatpush1.bf16.msra.mxu0 0
        %1636 = vmatprep.subr.bf16.mxu0 0
        %1637 = vmatpush1.bf16.msra.mxu0 0
        %1638 = vmatprep.subr.bf16.mxu0 0
        %1639 = vmatpush1.bf16.msra.mxu0 0
        %1640 = vmatprep.subr.bf16.mxu0 0
        %1641 = vmatpush1.bf16.msra.mxu0 %v1621
        %1642 = vmatprep.subr.bf16.mxu0 0
        %1643 = vmatpush2.bf16.msra.mxu0 0
        %1644 = vmatprep.subr.bf16.mxu0 0
        %1645 = vmatpush2.bf16.msra.mxu0 0
        %1646 = vmatprep.subr.bf16.mxu0 0
        %1647 = vmatpush2.bf16.msra.mxu0 0
        %1648 = vmatprep.subr.bf16.mxu0 0
        %1649 = vmatpush2.bf16.msra.mxu0 0
        %1650 = vmatprep.subr.bf16.mxu0 0
        %1651 = vmatpush2.bf16.msra.mxu0 0
        %1652 = vmatprep.subr.bf16.mxu0 0
        %1653 = vmatpush2.bf16.msra.mxu0 0
        %1654 = vmatprep.subr.bf16.mxu0 0
        %1655 = vmatpush2.bf16.msra.mxu0 0
        %1656 = vmatprep.subr.bf16.mxu0 0
        %1657 = vmatpush2.bf16.msra.mxu0 0
        %1658 = vmatprep.mubr.bf16.mxu0 0
        %1659 = vmatmul.mubr.bf16.gmra.mxu0 %v1624
        %v1660 = vpop.f32.mrf.mxu0
        %v1661 = vadd.f32 0.0, %v1660
        %v1662 = vpop.f32.mrf.mxu0
        %v1663 = vpop.f32.mrf.mxu0
        %v1664 = vadd.f32 0.0, %v1663
        %v1665 = vpop.f32.mrf.mxu0
        %1666 = vdwg.mxu0
        %vm1667 = vcmp.gt.f32.partialorder %v1661, 0.0
        %vm1668 = vcmp.gt.f32.partialorder %v1664, 0.0
        %v1669 = vmin.f32 %v1661, 0.0
        %v1670 = vmin.f32 %v1664, 0.0
        %v1671 = vmul.f32 %v1669, 1.442695
        %v1672 = vpow.pop %v1671
        %v1673 = vmul.f32 %v1670, 1.442695
        %v1674 = vpow.pop %v1673
        %v1675 = vsub.f32 %v1672, 1.0
        %v1676 = vsub.f32 %v1674, 1.0
        %v1677 = vsel %vm1667, %v1661, %v1675
        %v1678 = vsel %vm1668, %v1664, %v1676
        %1679 = vrot.lane.b32.xlu0 %v1066, 112
        %v1680 = vpop.permute.xlu0 %1679
        %1681 = vrot.lane.b32.xlu0 %v1067, 112
        %v1682 = vpop.permute.xlu0 %1681
        %v1685 = vadd.f32 %v1677, %v1680
        %v1686 = vadd.f32 %v1678, %v1682
        %1689 = vrot.lane.b32.xlu0 %v1685, 16
        %v1690 = vpop.permute.xlu0 %1689
        %1691 = vrot.lane.b32.xlu0 %v1686, 16
        %v1692 = vpop.permute.xlu0 %1691
        %1695 = vst.msk [vmem:[#allocation2] sm:$0xff] %vm993, %v1690
        %1696 = vst.msk [vmem:[#allocation2 + $0x8] sm:$0xff] %vm993, %v1692
        %1697 = vrot.lane.b32.xlu0 %v1133, 104
        %v1698 = vpop.permute.xlu0 %1697
        %v1701 = vsel %vm704, %v1479, 0
        %1703 = vmatprep.subr.bf16.mxu0 0
        %1704 = vmatpush1.bf16.msra.mxu0 0
        %1705 = vmatprep.subr.bf16.mxu0 0
        %1706 = vmatpush1.bf16.msra.mxu0 0
        %1707 = vmatprep.subr.bf16.mxu0 0
        %1708 = vmatpush1.bf16.msra.mxu0 0
        %1709 = vmatprep.subr.bf16.mxu0 0
        %1710 = vmatpush1.bf16.msra.mxu0 0
        %1711 = vmatprep.subr.bf16.mxu0 0
        %1712 = vmatpush1.bf16.msra.mxu0 0
        %1713 = vmatprep.subr.bf16.mxu0 0
        %1714 = vmatpush1.bf16.msra.mxu0 0
        %1715 = vmatprep.subr.bf16.mxu0 0
        %1716 = vmatpush1.bf16.msra.mxu0 0
        %1717 = vmatprep.subr.bf16.mxu0 0
        %1718 = vmatpush1.bf16.msra.mxu0 %v1698
        %1719 = vmatprep.subr.bf16.mxu0 0
        %1720 = vmatpush2.bf16.msra.mxu0 0
        %1721 = vmatprep.subr.bf16.mxu0 0
        %1722 = vmatpush2.bf16.msra.mxu0 0
        %1723 = vmatprep.subr.bf16.mxu0 0
        %1724 = vmatpush2.bf16.msra.mxu0 0
        %1725 = vmatprep.subr.bf16.mxu0 0
        %1726 = vmatpush2.bf16.msra.mxu0 0
        %1727 = vmatprep.subr.bf16.mxu0 0
        %1728 = vmatpush2.bf16.msra.mxu0 0
        %1729 = vmatprep.subr.bf16.mxu0 0
        %1730 = vmatpush2.bf16.msra.mxu0 0
        %1731 = vmatprep.subr.bf16.mxu0 0
        %1732 = vmatpush2.bf16.msra.mxu0 0
        %1733 = vmatprep.subr.bf16.mxu0 0
        %1734 = vmatpush2.bf16.msra.mxu0 0
        %1735 = vmatprep.mubr.bf16.mxu0 0
        %1736 = vmatmul.mubr.bf16.gmra.mxu0 %v1701
        %v1737 = vpop.f32.mrf.mxu0
        %v1738 = vadd.f32 0.0, %v1737
        %v1739 = vpop.f32.mrf.mxu0
        %v1740 = vpop.f32.mrf.mxu0
        %v1741 = vadd.f32 0.0, %v1740
        %v1742 = vpop.f32.mrf.mxu0
        %1743 = vdwg.mxu0
        %vm1744 = vcmp.gt.f32.partialorder %v1738, 0.0
        %vm1745 = vcmp.gt.f32.partialorder %v1741, 0.0
        %v1746 = vmin.f32 %v1738, 0.0
        %v1747 = vmin.f32 %v1741, 0.0
        %v1748 = vmul.f32 %v1746, 1.442695
        %v1749 = vpow.pop %v1748
        %v1750 = vmul.f32 %v1747, 1.442695
        %v1751 = vpow.pop %v1750
        %v1752 = vsub.f32 %v1749, 1.0
        %v1753 = vsub.f32 %v1751, 1.0
        %v1754 = vsel %vm1744, %v1738, %v1752
        %v1755 = vsel %vm1745, %v1741, %v1753
        %1756 = vrot.lane.b32.xlu0 %v1066, 104
        %v1757 = vpop.permute.xlu0 %1756
        %1758 = vrot.lane.b32.xlu0 %v1067, 104
        %v1759 = vpop.permute.xlu0 %1758
        %v1762 = vadd.f32 %v1754, %v1757
        %v1763 = vadd.f32 %v1755, %v1759
        %1766 = vrot.lane.b32.xlu0 %v1762, 24
        %v1767 = vpop.permute.xlu0 %1766
        %1768 = vrot.lane.b32.xlu0 %v1763, 24
        %v1769 = vpop.permute.xlu0 %1768
        %1772 = vst.msk [vmem:[#allocation2] sm:$0xff] %vm1063, %v1767
        %1773 = vst.msk [vmem:[#allocation2 + $0x8] sm:$0xff] %vm1063, %v1769
        %v1774 = vld [vmem:[#allocation2] sm:$0xff]
        %v1775 = vld [vmem:[#allocation2 + $0x8] sm:$0xff]
        %v1776 = vld [vmem:[#allocation6] sm:$0xf]
        %v1777 = vld [vmem:[#allocation6 + $0x4] sm:$0xf]
        %v1778 = vld [vmem:[#allocation6 + $0x8] sm:$0xf]
        %v1779 = vld [vmem:[#allocation6 + $0xc] sm:$0xf]
        %v1780 = vld [vmem:[%s7] sm:$0xf]
        %v1781 = vld [vmem:[%s7 + $0x4] sm:$0xf]
        %v1782 = vld [vmem:[%s7 + $0x8] sm:$0xf]
        %v1783 = vld [vmem:[%s7 + $0xc] sm:$0xf]
        %v1784 = vpack.c.bf16 %v1775, %v1774
        %v1789 = vunpack.c.l.b16 %v1776
        %v1790 = vunpack.c.l.b16 %v1777
        %v1791 = vunpack.c.l.b16 %v1778
        %v1792 = vunpack.c.l.b16 %v1779
        %v1793 = vpack.c.b16 %v1790, %v1789
        %v1794 = vpack.c.b16 %v1792, %v1791
        %v1798 = vsel %vm393, %v1784, 0
        %1800 = vmatprep.subr.bf16.mxu0 0
        %1801 = vmatpush1.bf16.msra.mxu0 0
        %1802 = vmatprep.subr.bf16.mxu0 0
        %1803 = vmatpush1.bf16.msra.mxu0 0
        %1804 = vmatprep.subr.bf16.mxu0 0
        %1805 = vmatpush1.bf16.msra.mxu0 0
        %1806 = vmatprep.subr.bf16.mxu0 0
        %1807 = vmatpush1.bf16.msra.mxu0 0
        %1808 = vmatprep.subr.bf16.mxu0 0
        %1809 = vmatpush1.bf16.msra.mxu0 0
        %1810 = vmatprep.subr.bf16.mxu0 0
        %1811 = vmatpush1.bf16.msra.mxu0 0
        %1812 = vmatprep.subr.bf16.mxu0 0
        %1813 = vmatpush1.bf16.msra.mxu0 %v1794
        %1814 = vmatprep.subr.bf16.mxu0 0
        %1815 = vmatpush1.bf16.msra.mxu0 %v1793
        %1816 = vmatprep.subr.bf16.mxu0 0
        %1817 = vmatpush2.bf16.msra.mxu0 0
        %1818 = vmatprep.subr.bf16.mxu0 0
        %1819 = vmatpush2.bf16.msra.mxu0 0
        %1820 = vmatprep.subr.bf16.mxu0 0
        %1821 = vmatpush2.bf16.msra.mxu0 0
        %1822 = vmatprep.subr.bf16.mxu0 0
        %1823 = vmatpush2.bf16.msra.mxu0 0
        %1824 = vmatprep.subr.bf16.mxu0 0
        %1825 = vmatpush2.bf16.msra.mxu0 0
        %1826 = vmatprep.subr.bf16.mxu0 0
        %1827 = vmatpush2.bf16.msra.mxu0 0
        %1828 = vmatprep.subr.bf16.mxu0 0
        %1829 = vmatpush2.bf16.msra.mxu0 0
        %1830 = vmatprep.subr.bf16.mxu0 0
        %1831 = vmatpush2.bf16.msra.mxu0 0
        %1832 = vmatprep.mubr.bf16.mxu0 0
        %1833 = vmatmul.mubr.bf16.gmra.mxu0 %v1798
        %v1834 = vpop.f32.mrf.mxu0
        %v1835 = vadd.f32 0.0, %v1834
        %v1836 = vpop.f32.mrf.mxu0
        %v1837 = vpop.f32.mrf.mxu0
        %v1838 = vadd.f32 0.0, %v1837
        %v1839 = vpop.f32.mrf.mxu0
        %1840 = vdwg.mxu0
        %v1841 = vpack.c.bf16 %v1838, %v1835
        %v1846 = vunpack.c.l.b16 %v1780
        %v1847 = vunpack.c.l.b16 %v1781
        %v1848 = vunpack.c.l.b16 %v1782
        %v1849 = vunpack.c.l.b16 %v1783
        %v1850 = vpack.c.b16 %v1847, %v1846
        %v1851 = vpack.c.b16 %v1849, %v1848
        %v1855 = vsel %vm393, %v1841, 0
        %1857 = vmatprep.subr.bf16.mxu0 0
        %1858 = vmatpush1.bf16.msra.mxu0 0
        %1859 = vmatprep.subr.bf16.mxu0 0
        %1860 = vmatpush1.bf16.msra.mxu0 0
        %1861 = vmatprep.subr.bf16.mxu0 0
        %1862 = vmatpush1.bf16.msra.mxu0 0
        %1863 = vmatprep.subr.bf16.mxu0 0
        %1864 = vmatpush1.bf16.msra.mxu0 0
        %1865 = vmatprep.subr.bf16.mxu0 0
        %1866 = vmatpush1.bf16.msra.mxu0 0
        %1867 = vmatprep.subr.bf16.mxu0 0
        %1868 = vmatpush1.bf16.msra.mxu0 0
        %1869 = vmatprep.subr.bf16.mxu0 0
        %1870 = vmatpush1.bf16.msra.mxu0 %v1851
        %1871 = vmatprep.subr.bf16.mxu0 0
        %1872 = vmatpush1.bf16.msra.mxu0 %v1850
        %1873 = vmatprep.subr.bf16.mxu0 0
        %1874 = vmatpush2.bf16.msra.mxu0 0
        %1875 = vmatprep.subr.bf16.mxu0 0
        %1876 = vmatpush2.bf16.msra.mxu0 0
        %1877 = vmatprep.subr.bf16.mxu0 0
        %1878 = vmatpush2.bf16.msra.mxu0 0
        %1879 = vmatprep.subr.bf16.mxu0 0
        %1880 = vmatpush2.bf16.msra.mxu0 0
        %1881 = vmatprep.subr.bf16.mxu0 0
        %1882 = vmatpush2.bf16.msra.mxu0 0
        %1883 = vmatprep.subr.bf16.mxu0 0
        %1884 = vmatpush2.bf16.msra.mxu0 0
        %1885 = vmatprep.subr.bf16.mxu0 0
        %1886 = vmatpush2.bf16.msra.mxu0 0
        %1887 = vmatprep.subr.bf16.mxu0 0
        %1888 = vmatpush2.bf16.msra.mxu0 0
        %1889 = vmatprep.mubr.bf16.mxu0 0
        %1890 = vmatmul.mubr.bf16.gmra.mxu0 %v1855
        %v1891 = vpop.f32.mrf.mxu0
        %v1892 = vadd.f32 0.0, %v1891
        %v1893 = vpop.f32.mrf.mxu0
        %v1894 = vpop.f32.mrf.mxu0
        %v1895 = vadd.f32 0.0, %v1894
        %v1896 = vpop.f32.mrf.mxu0
        %1897 = vdwg.mxu0
        %vm1898 = vcmask 15360
        %v1899 = vsel %vm1898, %v501, 0
        %v1902 = vsel %vm1898, %v1892, 0
        %v1905 = vsel %vm1898, %v1895, 0
        %1907 = vmatprep.subr.mxu0 0.0
        %1908 = vmatpush1.xpose.msra.mxu0 0.0
        %1909 = vmatprep.subr.mxu0 0.0
        %1910 = vmatpush1.xpose.msra.mxu0 0.0
        %1911 = vmatprep.subr.mxu0 0.0
        %1912 = vmatpush1.xpose.msra.mxu0 0.0
        %1913 = vmatprep.subr.mxu0 0.0
        %1914 = vmatpush1.xpose.msra.mxu0 0.0
        %1915 = vmatprep.subr.mxu0 0.0
        %1916 = vmatpush1.xpose.msra.mxu0 0.0
        %1917 = vmatprep.subr.mxu0 0.0
        %1918 = vmatpush1.xpose.msra.mxu0 0.0
        %1919 = vmatprep.subr.mxu0 0.0
        %1920 = vmatpush1.xpose.msra.mxu0 0.0
        %1921 = vmatprep.subr.mxu0 0.0
        %1922 = vmatpush1.xpose.msra.mxu0 0.0
        %1923 = vmatprep.subr.mxu0 0.0
        %1924 = vmatpush1.xpose.msra.mxu0 0.0
        %1925 = vmatprep.subr.mxu0 0.0
        %1926 = vmatpush1.xpose.msra.mxu0 0.0
        %1927 = vmatprep.subr.mxu0 0.0
        %1928 = vmatpush1.xpose.msra.mxu0 0.0
        %1929 = vmatprep.subr.mxu0 0.0
        %1930 = vmatpush1.xpose.msra.mxu0 0.0
        %1931 = vmatprep.subr.mxu0 0.0
        %1932 = vmatpush1.xpose.msra.mxu0 0.0
        %1933 = vmatprep.subr.mxu0 0.0
        %1934 = vmatpush1.xpose.msra.mxu0 0.0
        %1935 = vmatprep.subr.mxu0 0.0
        %1936 = vmatpush1.xpose.msra.mxu0 %v1905
        %1937 = vmatprep.subr.mxu0 0.0
        %1938 = vmatpush1.xpose.msra.mxu0 %v1902
        %1939 = vmatprep.subr.mxu0 0.0
        %1940 = vmatpush2.xpose.msra.mxu0 0.0
        %1941 = vmatprep.subr.mxu0 0.0
        %1942 = vmatpush2.xpose.msra.mxu0 0.0
        %1943 = vmatprep.subr.mxu0 0.0
        %1944 = vmatpush2.xpose.msra.mxu0 0.0
        %1945 = vmatprep.subr.mxu0 0.0
        %1946 = vmatpush2.xpose.msra.mxu0 0.0
        %1947 = vmatprep.subr.mxu0 0.0
        %1948 = vmatpush2.xpose.msra.mxu0 0.0
        %1949 = vmatprep.subr.mxu0 0.0
        %1950 = vmatpush2.xpose.msra.mxu0 0.0
        %1951 = vmatprep.subr.mxu0 0.0
        %1952 = vmatpush2.xpose.msra.mxu0 0.0
        %1953 = vmatprep.subr.mxu0 0.0
        %1954 = vmatpush2.xpose.msra.mxu0 0.0
        %1955 = vmatprep.subr.mxu0 0.0
        %1956 = vmatpush2.xpose.msra.mxu0 0.0
        %1957 = vmatprep.subr.mxu0 0.0
        %1958 = vmatpush2.xpose.msra.mxu0 0.0
        %1959 = vmatprep.subr.mxu0 0.0
        %1960 = vmatpush2.xpose.msra.mxu0 0.0
        %1961 = vmatprep.subr.mxu0 0.0
        %1962 = vmatpush2.xpose.msra.mxu0 0.0
        %1963 = vmatprep.subr.mxu0 0.0
        %1964 = vmatpush2.xpose.msra.mxu0 0.0
        %1965 = vmatprep.subr.mxu0 0.0
        %1966 = vmatpush2.xpose.msra.mxu0 0.0
        %1967 = vmatprep.subr.mxu0 0.0
        %1968 = vmatpush2.xpose.msra.mxu0 0.0
        %1969 = vmatprep.subr.mxu0 0.0
        %1970 = vmatpush2.xpose.msra.mxu0 0.0
        %1971 = vmatprep.mubr.f32.mxu0 0.0
        %1972 = vmatmul.mubr.f32.gmra.mxu0 %v1899
        %v1973 = vpop.f32.mrf.mxu0
        %v1974 = vadd.f32 0.0, %v1973
        %v1975 = vpop.f32.mrf.mxu0
        %1976 = vdwg.mxu0
        %v1977 = vlaneseq
        %v1978 = vshrl.u32 %v1977, 7
        %v1979 = vsub.s32 0, %v1978
        %v1980 = vrot.slane %v1974, %v1979
        %1982 = vbcast.lane.b32.xlu0 %v1980, 256
        %v1983 = vpop.permute.xlu0 %1982
        %s1985 = sor.u32 256, 8
        %1986 = vbcast.lane.b32.xlu0 %v1980, %s1985
        %v1987 = vpop.permute.xlu0 %1986
        %v1988 = vlaneseq
        %v1989 = vshrl.u32 %v1988, 7
        %v1990 = vsub.s32 1, %v1989
        %v1991 = vrot.slane %v1974, %v1990
        %v1992 = vadd.f32 %v1983, %v1991
        %v1993 = vadd.f32 %v1987, %v1991
        %v1994 = vmul.f32 %v1992, 0.2
        %v1995 = vmul.f32 %v1993, 0.2
        %v1996 = vmax.f32 %v1992, %v1994
        %v1997 = vmax.f32 %v1993, %v1995
        %v1998 = vadd.f32 %v1996, %v370
        %v1999 = vadd.f32 %v1997, %v371
        %v2000 = vsel %vm704, %v1998, -inf
        %2001 = vmax.xlane.f32.xlu0 %v2000
        %v2002 = vpop.xlane.xlu0 %2001
        %v2003 = vsel %vm704, %v1999, -inf
        %2004 = vmax.xlane.f32.xlu0 %v2003
        %v2005 = vpop.xlane.xlu0 %2004
        %v2006 = vsub.f32 %v1998, %v2002
        %v2007 = vsub.f32 %v1999, %v2005
        %v2008 = vmul.f32 %v2006, 1.442695
        %v2009 = vpow.pop %v2008
        %v2010 = vmul.f32 %v2007, 1.442695
        %v2011 = vpow.pop %v2010
        %v2012 = vsel %vm704, %v2009, 0.0
        %2013 = vadd.xlane.f32.xlu0 %v2012
        %v2014 = vpop.xlane.xlu0 %2013
        %v2015 = vsel %vm704, %v2011, 0.0
        %2016 = vadd.xlane.f32.xlu0 %v2015
        %v2017 = vpop.xlane.xlu0 %2016
        %v2018 = vrcp.pop %v2014
        %v2019 = vrcp.pop %v2017
        %v2020 = vmul.f32 %v2009, %v2018
        %v2021 = vmul.f32 %v2011, %v2019
        %v2022 = vpack.c.bf16 %v2021, %v2020
        %v2024 = vsel %vm704, %v2022, 0
        %2026 = vmatprep.subr.bf16.mxu0 0
        %2027 = vmatpush1.bf16.msra.mxu0 0
        %2028 = vmatprep.subr.bf16.mxu0 0
        %2029 = vmatpush1.bf16.msra.mxu0 0
        %2030 = vmatprep.subr.bf16.mxu0 0
        %2031 = vmatpush1.bf16.msra.mxu0 0
        %2032 = vmatprep.subr.bf16.mxu0 0
        %2033 = vmatpush1.bf16.msra.mxu0 0
        %2034 = vmatprep.subr.bf16.mxu0 0
        %2035 = vmatpush1.bf16.msra.mxu0 0
        %2036 = vmatprep.subr.bf16.mxu0 0
        %2037 = vmatpush1.bf16.msra.mxu0 0
        %2038 = vmatprep.subr.bf16.mxu0 0
        %2039 = vmatpush1.bf16.msra.mxu0 0
        %2040 = vmatprep.subr.bf16.mxu0 0
        %2041 = vmatpush1.bf16.msra.mxu0 %v1841
        %2042 = vmatprep.subr.bf16.mxu0 0
        %2043 = vmatpush2.bf16.msra.mxu0 0
        %2044 = vmatprep.subr.bf16.mxu0 0
        %2045 = vmatpush2.bf16.msra.mxu0 0
        %2046 = vmatprep.subr.bf16.mxu0 0
        %2047 = vmatpush2.bf16.msra.mxu0 0
        %2048 = vmatprep.subr.bf16.mxu0 0
        %2049 = vmatpush2.bf16.msra.mxu0 0
        %2050 = vmatprep.subr.bf16.mxu0 0
        %2051 = vmatpush2.bf16.msra.mxu0 0
        %2052 = vmatprep.subr.bf16.mxu0 0
        %2053 = vmatpush2.bf16.msra.mxu0 0
        %2054 = vmatprep.subr.bf16.mxu0 0
        %2055 = vmatpush2.bf16.msra.mxu0 0
        %2056 = vmatprep.subr.bf16.mxu0 0
        %2057 = vmatpush2.bf16.msra.mxu0 0
        %2058 = vmatprep.mubr.bf16.mxu0 0
        %2059 = vmatmul.mubr.bf16.gmra.mxu0 %v2024
        %v2060 = vpop.f32.mrf.mxu0
        %v2061 = vadd.f32 0.0, %v2060
        %v2062 = vpop.f32.mrf.mxu0
        %v2063 = vpop.f32.mrf.mxu0
        %v2064 = vadd.f32 0.0, %v2063
        %v2065 = vpop.f32.mrf.mxu0
        %2066 = vdwg.mxu0
        %vm2067 = vcmp.gt.f32.partialorder %v2061, 0.0
        %vm2068 = vcmp.gt.f32.partialorder %v2064, 0.0
        %v2069 = vmin.f32 %v2061, 0.0
        %v2070 = vmin.f32 %v2064, 0.0
        %v2071 = vmul.f32 %v2069, 1.442695
        %v2072 = vpow.pop %v2071
        %v2073 = vmul.f32 %v2070, 1.442695
        %v2074 = vpow.pop %v2073
        %v2075 = vsub.f32 %v2072, 1.0
        %v2076 = vsub.f32 %v2074, 1.0
        %v2077 = vsel %vm2067, %v2061, %v2075
        %v2078 = vsel %vm2068, %v2064, %v2076
        %v2079 = vadd.f32 %v2077, %v360
        %v2080 = vadd.f32 %v2078, %v361
        %2081 = vst.msk [vmem:[%s353] sm:$0xff] %vm393, %v2079
        %2082 = vst.msk [vmem:[%s353 + $0x8] sm:$0xff] %vm393, %v2080
        %s2083 = sand.u32 %s212, 1
        %s2084 = scalar_lea.sflag [#allocation5], %s2083
        %s2085 = sand.u32 %s212, 1
        %s2086 = smul.addr %s2085, 16
        %s2087 = scalar_lea.vmem [#allocation8], %s2086
        // Predicated region
        $region61: #{tpu_custom_call.1} parent=51 // pred_check
          %p2088 = pneg %p222
        $region62: #{tpu_custom_call.1} parent=51 // pred_check_branch
          %2090 = sbr.rel (%p2088) target = $region64
        $region63: #{tpu_custom_call.1} parent=51 // pred_region
          %s2092 = ssub.s32 256, 256
          %2093 = vsyncadd %s2084, %s2092
          %s2094 = smul.addr %s26, 2
          %s2095 = smul.addr %s2094, 128
          %s2096 = scalar_lea.hbm %s8, %s2095
          %s2097 = sshll.u32 %s2087, 4
          %s2098 = int_to_ptr.vmem [resolvable:$true] %s2097
          %2103 = dma.vmem_to_hbm [thread:$0]  %s2098, 256, %s2096, %s2084, 128, 128, 8
        $region64: #{tpu_custom_call.1} parent=51 // pred_fallthru
          _
      $region52: #{tpu_custom_call.1} parent=5 // pred_fallthru
        _
      %p2104 = scmp.le.s32.totalorder 2, %s21
      // Predicated region
      $region65: #{tpu_custom_call.1} parent=5 // pred_check
        %p2105 = pneg %p2104
      $region66: #{tpu_custom_call.1} parent=5 // pred_check_branch
        %2107 = sbr.rel (%p2105) target = $region68
      $region67: #{tpu_custom_call.1} parent=5 // pred_region
        %s2108 = ssub.s32 %s21, 2
        // Predicated region
        $region69: #{tpu_custom_call.1} parent=67 // pred_check
          %p2109 = pneg %p228
        $region70: #{tpu_custom_call.1} parent=67 // pred_check_branch
          %2111 = sbr.rel (%p2109) target = $region72
        $region71: #{tpu_custom_call.1} parent=67 // pred_region
          %s2112 = sand.u32 %s213, 1
          %s2113 = scalar_lea.sflag [#allocation5], %s2112
          %s2114 = sand.u32 %s213, 1
          %s2115 = smul.addr %s2114, 16
          %s2116 = scalar_lea.vmem [#allocation8], %s2115
          %2117 = dma.done %s2113, 256
        $region72: #{tpu_custom_call.1} parent=67 // pred_fallthru
          _
      $region68: #{tpu_custom_call.1} parent=5 // pred_fallthru
        _
    $region6: #{tpu_custom_call.1} parent=1 // loop_footer
      %s25 = sadd.s32 1, %s21
    $region7: #{tpu_custom_call.1} parent=1 // loop_footer_branch
      %20 = sbr.rel target = $region3
    $region8: #{tpu_custom_call.1} parent=1 // loop_exit
      _
    %2118 = vsyncpa [#allocation4], 1
    %s2119 = scalar_lea.sflag [#allocation4], 1
    %2120 = vsyncpa %s2119, 1
    %2121 = vsyncpa [#allocation7], 1
    %2122 = vsyncpa [#allocation5], 1
    %s2123 = scalar_lea.sflag [#allocation5], 1
    %2124 = vsyncpa %s2123, 1

</llo_original>
